<compile_context>
chip_gen: v7x
topology: tpu7x:2x2x1
jax: 0.10.0
libtpu: 0.0.40
codegen_flags: <defaults>
</compile_context>

<pallas_src>
import jax
import jax.numpy as jnp
from jax.experimental import pallas as pl
from jax.experimental.pallas import tpu as pltpu

NEG_INF = -1e30
VOCAB_TILE = 128  # lane tile for the output projection / running argmax


# ----------------------------------------------------------------------------
# Fused full-sequence decoder kernel
# ----------------------------------------------------------------------------
def fused_decoder_kernel(tf_ref,                               # SMEM (T-1,) int32
                         enc_ref, escore_ref, vhid_ref, h0_ref,
                         bos_ref, tgt_ref, emb_ref,
                         gWx_ref, gWc_ref, gWh_ref, gbi_ref, gbh_ref,
                         oW_ref, ob_ref,
                         logits_ref, ids_ref,                  # outputs
                         h_scr, emb_scr):                      # VMEM carries
    t = pl.program_id(0)
    H = h_scr.shape[-1]
    Bp = h_scr.shape[0]
    Vp = logits_ref.shape[-1]

    @pl.when(t == 0)
    def _init():
        h_scr[...] = h0_ref[...]          # decoder hidden <- encoder final hidden
        emb_scr[...] = bos_ref[...]       # previous word   <- BOS embedding

    h = h_scr[...]                        # (Bp, H) f32

    # ---- input word: teacher forcing vs. previous prediction ---------------
    use_tf = tf_ref[t] == 1
    x = jnp.where(use_tf, tgt_ref[0], emb_scr[...])            # (Bp, W) bf16

    # ---- folded attention: scores = enc·v_enc (precomputed) + h·v_hid ------
    hs = jnp.sum(h * vhid_ref[...], axis=-1, keepdims=True)    # (Bp, 1)
    scores = escore_ref[...] + hs                              # (Bp, S)
    scores = scores - jnp.max(scores, axis=-1, keepdims=True)
    p = jnp.exp(scores)
    attn = p / jnp.sum(p, axis=-1, keepdims=True)              # exact softmax
    context = jnp.sum(attn[:, :, None] * enc_ref[...], axis=1)  # (Bp, H) f32

    # ---- fused GRU cell on cat([word_emb, context]); gate order (r, z, n) --
    hb = h.astype(jnp.bfloat16)
    cb = context.astype(jnp.bfloat16)
    gi = (jnp.dot(x, gWx_ref[...], preferred_element_type=jnp.float32)
          + jnp.dot(cb, gWc_ref[...], preferred_element_type=jnp.float32)
          + gbi_ref[...])                                       # (Bp, 3H)
    gh = (jnp.dot(hb, gWh_ref[...], preferred_element_type=jnp.float32)
          + gbh_ref[...])                                       # (Bp, 3H)
    r = jax.nn.sigmoid(gi[:, :H] + gh[:, :H])
    z = jax.nn.sigmoid(gi[:, H:2 * H] + gh[:, H:2 * H])
    n = jnp.tanh(gi[:, 2 * H:] + r * gh[:, 2 * H:])
    h_new = (1.0 - z) * n + z * h                               # (Bp, H) f32
    h_scr[...] = h_new

    # ---- output projection tiled over vocab + running first-max argmax -----
    hnb = h_new.astype(jnp.bfloat16)
    n_tiles = Vp // VOCAB_TILE

    def vt_body(i, carry):
        run_max, run_idx = carry
        start = pl.multiple_of(i * VOCAB_TILE, VOCAB_TILE)
        lg = (jnp.dot(hnb, oW_ref[:, pl.ds(start, VOCAB_TILE)],
                      preferred_element_type=jnp.float32)
              + ob_ref[:, pl.ds(start, VOCAB_TILE)])            # (Bp, 128)
        logits_ref[0, :, pl.ds(start, VOCAB_TILE)] = lg
        col = jax.lax.broadcasted_iota(jnp.int32, lg.shape, 1) + start
        tmax = jnp.max(lg, axis=-1, keepdims=True)
        tidx = jnp.min(jnp.where(lg >= tmax, col, jnp.int32(2**30)),
                       axis=-1, keepdims=True)                  # first max in tile
        better = tmax > run_max                                 # strict -> first tile wins ties
        return jnp.maximum(run_max, tmax), jnp.where(better, tidx, run_idx)

    run_max0 = jnp.full((Bp, 1), -jnp.inf, jnp.float32)
    run_idx0 = jnp.zeros((Bp, 1), jnp.int32)
    _, next_ids = jax.lax.fori_loop(0, n_tiles, vt_body, (run_max0, run_idx0))

    ids_ref[0] = jnp.broadcast_to(next_ids, ids_ref.shape[1:])  # (Bp, 128) int32

    # ---- next-word embedding for the feedback path (small vocab: one-hot) --
    EV = emb_ref.shape[0]
    vocab_ids = jax.lax.broadcasted_iota(jnp.int32, (Bp, EV), 1)
    onehot = (vocab_ids == next_ids).astype(jnp.bfloat16)       # (Bp, EV)
    next_emb = jnp.dot(onehot, emb_ref[...],
                       preferred_element_type=jnp.float32)      # (Bp, W)
    emb_scr[...] = next_emb.astype(jnp.bfloat16)


def _const_spec(shape):
    nd = len(shape)
    return pl.BlockSpec(shape, lambda t, tf, _nd=nd: (0,) * _nd)


def make_fused_decoder(T1, Bp, S, H, W, EV, Vp):
    in_specs = [
        _const_spec((Bp, S, H)),                                 # encoder_output
        _const_spec((Bp, S)),                                    # folded enc scores
        _const_spec((1, H)),                                     # folded v_hid
        _const_spec((Bp, H)),                                    # h0
        _const_spec((Bp, W)),                                    # BOS embedding
        pl.BlockSpec((1, Bp, W), lambda t, tf: (t, 0, 0)),       # teacher-forced emb
        _const_spec((EV, W)),                                    # embedding table (bf16)
        _const_spec((W, 3 * H)),                                 # GRU W_ih (word)
        _const_spec((H, 3 * H)),                                 # GRU W_ih (context)
        _const_spec((H, 3 * H)),                                 # GRU W_hh
        _const_spec((1, 3 * H)),                                 # GRU b_ih
        _const_spec((1, 3 * H)),                                 # GRU b_hh
        _const_spec((H, Vp)),                                    # output proj (bf16, padded)
        _const_spec((1, Vp)),                                    # output bias (padded, -1e30)
    ]
    out_specs = [
        pl.BlockSpec((1, Bp, Vp), lambda t, tf: (t, 0, 0)),      # logits
        pl.BlockSpec((1, Bp, 128), lambda t, tf: (t, 0, 0)),     # predicted ids
    ]
    grid_spec = pltpu.PrefetchScalarGridSpec(
        num_scalar_prefetch=1,
        grid=(T1,),
        in_specs=in_specs,
        out_specs=out_specs,
        scratch_shapes=[pltpu.VMEM((Bp, H), jnp.float32),
                        pltpu.VMEM((Bp, W), jnp.bfloat16)],
    )
    return pl.pallas_call(
        fused_decoder_kernel,
        out_shape=(jax.ShapeDtypeStruct((T1, Bp, Vp), jnp.float32),
                   jax.ShapeDtypeStruct((T1, Bp, 128), jnp.int32)),
        grid_spec=grid_spec,
        compiler_params=pltpu.CompilerParams(
            dimension_semantics=("arbitrary",),      # time axis carries state
            vmem_limit_bytes=64 * 1024 * 1024),
    )


# ----------------------------------------------------------------------------
# Parameters (deterministic synthetic init; shapes mirror the torch module)
# ----------------------------------------------------------------------------
def init_params(key, H, W, V, emb_vocab):
    ks = jax.random.split(key, 16)

    def init(k, shape, scale=0.08):
        return jax.random.normal(k, shape, jnp.float32) * scale

    return dict(
        embedding=init(ks[0], (emb_vocab, W)),        # nn.Embedding
        aW1e=init(ks[1], (H, 3 * H)),                 # attention.linear1 (enc half)
        aW1h=init(ks[2], (H, 3 * H)),                 # attention.linear1 (hid half)
        ab1=init(ks[3], (1, 3 * H)),
        aW2=init(ks[4], (3 * H, 2 * H)),              # attention.linear2
        ab2=init(ks[5], (1, 2 * H)),
        aW3=init(ks[6], (2 * H, H)),                  # attention.linear3
        ab3=init(ks[7], (1, H)),
        aW4=init(ks[8], (1, H)),                      # attention.to_weight (no bias)
        gWx=init(ks[9], (W, 3 * H)),                  # GRU W_ih (word part), gates (r,z,n)
        gWc=init(ks[10], (H, 3 * H)),                 # GRU W_ih (context part)
        gWh=init(ks[11], (H, 3 * H)),                 # GRU W_hh
        gbi=init(ks[12], (1, 3 * H)),
        gbh=init(ks[13], (1, 3 * H)),
        oW=init(ks[14], (H, V)),                      # final_output_layer
        ob=init(ks[15], (1, V)),
    )


# ----------------------------------------------------------------------------
# decoderRNN.forward
# ----------------------------------------------------------------------------
def decoder_forward(params, encoder_final_hidden_state, encoder_output,
                    targets, tr_steps, key):
    f32, bf16 = jnp.float32, jnp.bfloat16
    B, S, H = encoder_output.shape
    emb = params['embedding']
    EV, W = emb.shape
    V = params['oW'].shape[1]
    T = targets.shape[1]
    T1 = T - 1
    Vp = ((V + 127) // 128) * 128
    Bp = ((B + 7) // 8) * 8                                      # sublane-dense batch

    # ---- fold the purely-linear attention MLP into two (H,) vectors --------
    w3 = params['aW3'] @ params['aW4'].T                         # (2H, 1)
    w2 = params['aW2'] @ w3                                      # (3H, 1)
    v_enc = params['aW1e'] @ w2                                  # (H, 1)
    v_hid = (params['aW1h'] @ w2).T                              # (1, H)
    c_att = (params['ab1'] @ w2 + params['ab2'] @ w3
             + params['ab3'] @ params['aW4'].T)                  # (1, 1) (cancels in softmax)

    def pad_batch(x):
        return jnp.pad(x, ((0, Bp - B),) + ((0, 0),) * (x.ndim - 1))

    enc_p = pad_batch(encoder_output)                            # (Bp, S, H)
    enc_scores = (jnp.einsum('bsh,h->bs', enc_p, v_enc[:, 0])
                  + c_att[0, 0]).astype(f32)                     # (Bp, S), time-invariant
    h0_p = pad_batch(encoder_final_hidden_state[0])              # (Bp, H)

    emb_bf = emb.astype(bf16)                                    # bf16 MXU-side weights
    bos_p = pad_batch(emb_bf[jnp.ones((B,), jnp.int32)])         # BOS id = 1
    tgt_emb = jnp.transpose(emb_bf[targets[:, :T1]], (1, 0, 2))  # (T-1, B, W)
    tgt_emb = jnp.pad(tgt_emb, ((0, 0), (0, Bp - B), (0, 0)))

    # lane-dense padded output projection; padded vocab columns biased to -inf
    oW_pad = jnp.zeros((H, Vp), f32).at[:, :V].set(params['oW']).astype(bf16)
    ob_pad = jnp.full((1, Vp), NEG_INF, f32).at[:, :V].set(params['ob'])

    # teacher_forcing_ratio = expit(tr_steps / 20 + 0.85)
    # torch: random.uniform(0.05, 0.995) > threshold  -> use ground truth
    threshold = jax.nn.sigmoid(jnp.asarray(tr_steps, f32) / 20.0 + 0.85)
    u = jax.random.uniform(key, (T1,), minval=0.05, maxval=0.995)
    tf_flags = (u > threshold).astype(jnp.int32)                 # (T-1,)

    step_fn = make_fused_decoder(T1, Bp, S, H, W, EV, Vp)
    logits_tbv, ids_tb = step_fn(
        tf_flags, enc_p, enc_scores, v_hid.astype(f32), h0_p, bos_p, tgt_emb,
        emb_bf,
        params['gWx'].astype(bf16), params['gWc'].astype(bf16),
        params['gWh'].astype(bf16), params['gbi'], params['gbh'],
        oW_pad, ob_pad)

    # torch returns raw final_output_layer outputs (no log_softmax)
    logP_sequence = jnp.transpose(logits_tbv[:, :B, :V], (1, 0, 2))   # (B, T-1, V)
    predicted_sequence = jnp.transpose(ids_tb[:, :B, 0], (1, 0))      # (B, T-1)
    return logP_sequence, predicted_sequence


# ----------------------------------------------------------------------------
if __name__ == "__main__":
    # small shapes consistent with the module (hidden=512 / word_dim=1024 scaled down,
    # kept lane-aligned: H, W multiples of 128)
    B, S, H, W, V = 2, 8, 128, 256, 300
    emb_vocab = V + 4          # nn.Embedding(len(ind2words) + 4, word_dim)
    T = 6                      # target caption length

    key = jax.random.PRNGKey(0)
    kp, ke, kh, kt, kloop = jax.random.split(key, 5)

    params = init_params(kp, H, W, V, emb_vocab)
    encoder_output = jax.random.normal(ke, (B, S, H), jnp.float32)
    encoder_final_hidden_state = jax.random.normal(kh, (1, B, H), jnp.float32)
    targets = jax.random.randint(kt, (B, T), 0, emb_vocab, dtype=jnp.int32)

    fwd = jax.jit(decoder_forward)
    logP, pred = fwd(params, encoder_final_hidden_state, encoder_output,
                     targets, jnp.float32(10.0), kloop)
    jax.block_until_ready((logP, pred))

    assert logP.shape == (B, T - 1, V) and pred.shape == (B, T - 1)
    assert bool(jnp.all(jnp.isfinite(logP)))
    # in-kernel running argmax must agree with a reference argmax over the logits
    assert bool(jnp.all(pred == jnp.argmax(logP, axis=-1)))
    print("KERNEL_OK")
</pallas_src>

<mosaic_0001>
module attributes {stable_mosaic.version = 11 : i64} {
  func.func @fused_decoder_kernel(%arg0: i32, %arg1: memref<5xi32, #tpu.memory_space<smem>>, %arg2: memref<8x8x128xf32, #tpu.memory_space<vmem>>, %arg3: memref<8x8xf32, #tpu.memory_space<vmem>>, %arg4: memref<1x128xf32, #tpu.memory_space<vmem>>, %arg5: memref<8x128xf32, #tpu.memory_space<vmem>>, %arg6: memref<8x256xbf16, #tpu.memory_space<vmem>>, %arg7: memref<1x8x256xbf16, #tpu.memory_space<vmem>>, %arg8: memref<304x256xbf16, #tpu.memory_space<vmem>>, %arg9: memref<256x384xbf16, #tpu.memory_space<vmem>>, %arg10: memref<128x384xbf16, #tpu.memory_space<vmem>>, %arg11: memref<128x384xbf16, #tpu.memory_space<vmem>>, %arg12: memref<1x384xf32, #tpu.memory_space<vmem>>, %arg13: memref<1x384xf32, #tpu.memory_space<vmem>>, %arg14: memref<128x384xbf16, #tpu.memory_space<vmem>>, %arg15: memref<1x384xf32, #tpu.memory_space<vmem>>, %arg16: memref<1x8x384xf32, #tpu.memory_space<vmem>>, %arg17: memref<1x8x128xi32, #tpu.memory_space<vmem>>, %arg18: memref<8x128xf32, #tpu.memory_space<vmem>>, %arg19: memref<8x256xbf16, #tpu.memory_space<vmem>>) attributes {dimension_semantics = [#tpu.dimension_semantics<arbitrary>], iteration_bounds = array<i64: 5>, scalar_prefetch = 1 : i64, scratch_operands = 2 : i64, tpu.core_type = #tpu.core_type<tc>, window_params = [{pipeline_mode = #tpu.pipeline_mode<synchronous>, transform_indices = @transform_0, window_bounds = array<i64: 8, 8, 128>}, {pipeline_mode = #tpu.pipeline_mode<synchronous>, transform_indices = @transform_1, window_bounds = array<i64: 8, 8>}, {pipeline_mode = #tpu.pipeline_mode<synchronous>, transform_indices = @transform_2, window_bounds = array<i64: 1, 128>}, {pipeline_mode = #tpu.pipeline_mode<synchronous>, transform_indices = @transform_3, window_bounds = array<i64: 8, 128>}, {pipeline_mode = #tpu.pipeline_mode<synchronous>, transform_indices = @transform_4, window_bounds = array<i64: 8, 256>}, {transform_indices = @transform_5, window_bounds = array<i64: 1, 8, 256>}, {pipeline_mode = #tpu.pipeline_mode<synchronous>, transform_indices = @transform_6, window_bounds = array<i64: 304, 256>}, {pipeline_mode = #tpu.pipeline_mode<synchronous>, transform_indices = @transform_7, window_bounds = array<i64: 256, 384>}, {pipeline_mode = #tpu.pipeline_mode<synchronous>, transform_indices = @transform_8, window_bounds = array<i64: 128, 384>}, {pipeline_mode = #tpu.pipeline_mode<synchronous>, transform_indices = @transform_9, window_bounds = array<i64: 128, 384>}, {pipeline_mode = #tpu.pipeline_mode<synchronous>, transform_indices = @transform_10, window_bounds = array<i64: 1, 384>}, {pipeline_mode = #tpu.pipeline_mode<synchronous>, transform_indices = @transform_11, window_bounds = array<i64: 1, 384>}, {pipeline_mode = #tpu.pipeline_mode<synchronous>, transform_indices = @transform_12, window_bounds = array<i64: 128, 384>}, {pipeline_mode = #tpu.pipeline_mode<synchronous>, transform_indices = @transform_13, window_bounds = array<i64: 1, 384>}, {transform_indices = @transform_14, window_bounds = array<i64: 1, 8, 384>}, {transform_indices = @transform_15, window_bounds = array<i64: 1, 8, 128>}]} {
    %c0_i32 = arith.constant 0 : i32
    %0 = arith.cmpi eq, %arg0, %c0_i32 : i32
    %1 = arith.extui %0 : i1 to i32
    %c0_i32_0 = arith.constant 0 : i32
    %2 = arith.cmpi ne, %1, %c0_i32_0 : i32
    scf.if %2 {
      %c0_48 = arith.constant 0 : index
      %c0_49 = arith.constant 0 : index
      %95 = vector.load %arg5[%c0_48, %c0_49] : memref<8x128xf32, #tpu.memory_space<vmem>>, vector<8x128xf32>
      %c0_50 = arith.constant 0 : index
      %c0_51 = arith.constant 0 : index
      %96 = vector.load %arg18[%c0_50, %c0_51] : memref<8x128xf32, #tpu.memory_space<vmem>>, vector<8x128xf32>
      tpu.vector_store %arg18[%c0_50, %c0_51], %95 {strides = array<i32>} : memref<8x128xf32, #tpu.memory_space<vmem>>, vector<8x128xf32>,
      %c0_52 = arith.constant 0 : index
      %c0_53 = arith.constant 0 : index
      %97 = vector.load %arg6[%c0_52, %c0_53] : memref<8x256xbf16, #tpu.memory_space<vmem>>, vector<8x256xbf16>
      %c0_54 = arith.constant 0 : index
      %c0_55 = arith.constant 0 : index
      %98 = vector.load %arg19[%c0_54, %c0_55] : memref<8x256xbf16, #tpu.memory_space<vmem>>, vector<8x256xbf16>
      tpu.vector_store %arg19[%c0_54, %c0_55], %97 {strides = array<i32>} : memref<8x256xbf16, #tpu.memory_space<vmem>>, vector<8x256xbf16>,
    } else {
    }
    %c0 = arith.constant 0 : index
    %c0_1 = arith.constant 0 : index
    %3 = vector.load %arg18[%c0, %c0_1] : memref<8x128xf32, #tpu.memory_space<vmem>>, vector<8x128xf32>
    %4 = arith.index_cast %arg0 : i32 to index
    %5 = memref.load %arg1[%4] : memref<5xi32, #tpu.memory_space<smem>>
    %c1_i32 = arith.constant 1 : i32
    %6 = arith.cmpi eq, %5, %c1_i32 : i32
    %c0_2 = arith.constant 0 : index
    %c0_3 = arith.constant 0 : index
    %c0_4 = arith.constant 0 : index
    %7 = vector.load %arg7[%c0_2, %c0_3, %c0_4] : memref<1x8x256xbf16, #tpu.memory_space<vmem>>, vector<1x8x256xbf16>
    %8 = vector.shape_cast %7 : vector<1x8x256xbf16> to vector<8x256xbf16>
    %c0_5 = arith.constant 0 : index
    %c0_6 = arith.constant 0 : index
    %9 = vector.load %arg19[%c0_5, %c0_6] : memref<8x256xbf16, #tpu.memory_space<vmem>>, vector<8x256xbf16>
    %10 = arith.select %6, %8, %9 : vector<8x256xbf16>
    %c0_7 = arith.constant 0 : index
    %c0_8 = arith.constant 0 : index
    %11 = vector.load %arg4[%c0_7, %c0_8] : memref<1x128xf32, #tpu.memory_space<vmem>>, vector<1x128xf32>
    %12 = vector.broadcast %11 : vector<1x128xf32> to vector<8x128xf32>
    %13 = arith.mulf %3, %12 : vector<8x128xf32>
    %cst = arith.constant dense<0.000000e+00> : vector<8xf32>
    %14 = vector.multi_reduction <add>, %13, %cst [1] : vector<8x128xf32> to vector<8xf32>
    %15 = vector.shape_cast %14 : vector<8xf32> to vector<8x1xf32>
    %c0_9 = arith.constant 0 : index
    %c0_10 = arith.constant 0 : index
    %16 = vector.load %arg3[%c0_9, %c0_10] : memref<8x8xf32, #tpu.memory_space<vmem>>, vector<8x8xf32>
    %17 = vector.broadcast %15 : vector<8x1xf32> to vector<8x8xf32>
    %18 = arith.addf %16, %17 : vector<8x8xf32>
    %cst_11 = arith.constant dense<0xFF800000> : vector<8xf32>
    %19 = vector.multi_reduction <maximumf>, %18, %cst_11 [1] : vector<8x8xf32> to vector<8xf32>
    %20 = vector.shape_cast %19 : vector<8xf32> to vector<8x1xf32>
    %21 = vector.broadcast %20 : vector<8x1xf32> to vector<8x8xf32>
    %22 = arith.subf %18, %21 : vector<8x8xf32>
    %23 = math.exp %22 : vector<8x8xf32>
    %cst_12 = arith.constant dense<0.000000e+00> : vector<8xf32>
    %24 = vector.multi_reduction <add>, %23, %cst_12 [1] : vector<8x8xf32> to vector<8xf32>
    %25 = vector.shape_cast %24 : vector<8xf32> to vector<8x1xf32>
    %26 = vector.broadcast %25 : vector<8x1xf32> to vector<8x8xf32>
    %27 = arith.divf %23, %26 : vector<8x8xf32>
    %28 = vector.shape_cast %27 : vector<8x8xf32> to vector<8x8x1xf32>
    %c0_13 = arith.constant 0 : index
    %c0_14 = arith.constant 0 : index
    %c0_15 = arith.constant 0 : index
    %29 = vector.load %arg2[%c0_13, %c0_14, %c0_15] : memref<8x8x128xf32, #tpu.memory_space<vmem>>, vector<8x8x128xf32>
    %30 = vector.broadcast %28 : vector<8x8x1xf32> to vector<8x8x128xf32>
    %31 = arith.mulf %30, %29 : vector<8x8x128xf32>
    %cst_16 = arith.constant dense<0.000000e+00> : vector<8x128xf32>
    %32 = vector.multi_reduction <add>, %31, %cst_16 [1] : vector<8x8x128xf32> to vector<8x128xf32>
    %33 = arith.truncf %3 : vector<8x128xf32> to vector<8x128xbf16>
    %34 = arith.truncf %32 : vector<8x128xf32> to vector<8x128xbf16>
    %c0_17 = arith.constant 0 : index
    %c0_18 = arith.constant 0 : index
    %35 = vector.load %arg9[%c0_17, %c0_18] : memref<256x384xbf16, #tpu.memory_space<vmem>>, vector<256x384xbf16>
    %cst_19 = arith.constant dense<0.000000e+00> : vector<8x384xf32>
    %36 = tpu.matmul %10, %35, %cst_19 {dimension_numbers = #tpu.dot_dimension_numbers<[1], [0], [0], [1], [0, 0, 1, 1], [], []>} : vector<8x256xbf16>, vector<256x384xbf16>, vector<8x384xf32> -> vector<8x384xf32>
    %c0_20 = arith.constant 0 : index
    %c0_21 = arith.constant 0 : index
    %37 = vector.load %arg10[%c0_20, %c0_21] : memref<128x384xbf16, #tpu.memory_space<vmem>>, vector<128x384xbf16>
    %cst_22 = arith.constant dense<0.000000e+00> : vector<8x384xf32>
    %38 = tpu.matmul %34, %37, %cst_22 {dimension_numbers = #tpu.dot_dimension_numbers<[1], [0], [0], [1], [0, 0, 1, 1], [], []>} : vector<8x128xbf16>, vector<128x384xbf16>, vector<8x384xf32> -> vector<8x384xf32>
    %39 = arith.addf %36, %38 : vector<8x384xf32>
    %c0_23 = arith.constant 0 : index
    %c0_24 = arith.constant 0 : index
    %40 = vector.load %arg12[%c0_23, %c0_24] : memref<1x384xf32, #tpu.memory_space<vmem>>, vector<1x384xf32>
    %41 = vector.broadcast %40 : vector<1x384xf32> to vector<8x384xf32>
    %42 = arith.addf %39, %41 : vector<8x384xf32>
    %c0_25 = arith.constant 0 : index
    %c0_26 = arith.constant 0 : index
    %43 = vector.load %arg11[%c0_25, %c0_26] : memref<128x384xbf16, #tpu.memory_space<vmem>>, vector<128x384xbf16>
    %cst_27 = arith.constant dense<0.000000e+00> : vector<8x384xf32>
    %44 = tpu.matmul %33, %43, %cst_27 {dimension_numbers = #tpu.dot_dimension_numbers<[1], [0], [0], [1], [0, 0, 1, 1], [], []>} : vector<8x128xbf16>, vector<128x384xbf16>, vector<8x384xf32> -> vector<8x384xf32>
    %c0_28 = arith.constant 0 : index
    %c0_29 = arith.constant 0 : index
    %45 = vector.load %arg13[%c0_28, %c0_29] : memref<1x384xf32, #tpu.memory_space<vmem>>, vector<1x384xf32>
    %46 = vector.broadcast %45 : vector<1x384xf32> to vector<8x384xf32>
    %47 = arith.addf %44, %46 : vector<8x384xf32>
    %48 = vector.extract_strided_slice %42 {offsets = [0, 0], sizes = [8, 128], strides = [1, 1]} : vector<8x384xf32> to vector<8x128xf32>
    %49 = vector.extract_strided_slice %47 {offsets = [0, 0], sizes = [8, 128], strides = [1, 1]} : vector<8x384xf32> to vector<8x128xf32>
    %50 = arith.addf %48, %49 : vector<8x128xf32>
    %51 = arith.negf %50 : vector<8x128xf32>
    %52 = math.exp %51 : vector<8x128xf32>
    %cst_30 = arith.constant 1.000000e+00 : f32
    %53 = vector.broadcast %cst_30 : f32 to vector<8x128xf32>
    %54 = arith.addf %53, %52 : vector<8x128xf32>
    %55 = arith.divf %53, %54 : vector<8x128xf32>
    %56 = vector.extract_strided_slice %42 {offsets = [0, 128], sizes = [8, 128], strides = [1, 1]} : vector<8x384xf32> to vector<8x128xf32>
    %57 = vector.extract_strided_slice %47 {offsets = [0, 128], sizes = [8, 128], strides = [1, 1]} : vector<8x384xf32> to vector<8x128xf32>
    %58 = arith.addf %56, %57 : vector<8x128xf32>
    %59 = arith.negf %58 : vector<8x128xf32>
    %60 = math.exp %59 : vector<8x128xf32>
    %cst_31 = arith.constant 1.000000e+00 : f32
    %61 = vector.broadcast %cst_31 : f32 to vector<8x128xf32>
    %62 = arith.addf %61, %60 : vector<8x128xf32>
    %63 = arith.divf %61, %62 : vector<8x128xf32>
    %64 = vector.extract_strided_slice %42 {offsets = [0, 256], sizes = [8, 128], strides = [1, 1]} : vector<8x384xf32> to vector<8x128xf32>
    %65 = vector.extract_strided_slice %47 {offsets = [0, 256], sizes = [8, 128], strides = [1, 1]} : vector<8x384xf32> to vector<8x128xf32>
    %66 = arith.mulf %55, %65 : vector<8x128xf32>
    %67 = arith.addf %64, %66 : vector<8x128xf32>
    %68 = math.tanh %67 : vector<8x128xf32>
    %cst_32 = arith.constant 1.000000e+00 : f32
    %69 = vector.broadcast %cst_32 : f32 to vector<8x128xf32>
    %70 = arith.subf %69, %63 : vector<8x128xf32>
    %71 = arith.mulf %70, %68 : vector<8x128xf32>
    %72 = arith.mulf %63, %3 : vector<8x128xf32>
    %73 = arith.addf %71, %72 : vector<8x128xf32>
    %c0_33 = arith.constant 0 : index
    %c0_34 = arith.constant 0 : index
    %74 = vector.load %arg18[%c0_33, %c0_34] : memref<8x128xf32, #tpu.memory_space<vmem>>, vector<8x128xf32>
    tpu.vector_store %arg18[%c0_33, %c0_34], %73 {strides = array<i32>} : memref<8x128xf32, #tpu.memory_space<vmem>>, vector<8x128xf32>,
    %75 = arith.truncf %73 : vector<8x128xf32> to vector<8x128xbf16>
    %cst_35 = arith.constant 0xFF800000 : f32
    %76 = vector.broadcast %cst_35 : f32 to vector<8x1xf32>
    %c0_i32_36 = arith.constant 0 : i32
    %77 = vector.broadcast %c0_i32_36 : i32 to vector<8x1xi32>
    %c0_i32_37 = arith.constant 0 : i32
    %c3_i32 = arith.constant 3 : i32
    %78 = arith.addi %c0_i32_37, %c3_i32 : i32
    %c1_i32_38 = arith.constant 1 : i32
    %79:2 = scf.for %arg20 = %c0_i32_37 to %78 step %c1_i32_38 iter_args(%arg21 = %76, %arg22 = %77) -> (vector<8x1xf32>, vector<8x1xi32>)  : i32 {
      %c128_i32 = arith.constant 128 : i32
      %95 = arith.muli %arg20, %c128_i32 : i32
      %96 = tpu.assume_multiple %95, 128 : i32
      %c0_48 = arith.constant 0 : index
      %97 = arith.index_cast %96 : i32 to index
      %98 = vector.load %arg14[%c0_48, %97] : memref<128x384xbf16, #tpu.memory_space<vmem>>, vector<128x128xbf16>
      %cst_49 = arith.constant dense<0.000000e+00> : vector<8x128xf32>
      %99 = tpu.matmul %75, %98, %cst_49 {dimension_numbers = #tpu.dot_dimension_numbers<[1], [0], [0], [1], [0, 0, 1, 1], [], []>} : vector<8x128xbf16>, vector<128x128xbf16>, vector<8x128xf32> -> vector<8x128xf32>
      %c0_50 = arith.constant 0 : index
      %100 = arith.index_cast %96 : i32 to index
      %101 = vector.load %arg15[%c0_50, %100] : memref<1x384xf32, #tpu.memory_space<vmem>>, vector<1x128xf32>
      %102 = vector.broadcast %101 : vector<1x128xf32> to vector<8x128xf32>
      %103 = arith.addf %99, %102 : vector<8x128xf32>
      %c0_51 = arith.constant 0 : index
      %c0_52 = arith.constant 0 : index
      %104 = arith.index_cast %96 : i32 to index
      %105 = vector.load %arg16[%c0_51, %c0_52, %104] : memref<1x8x384xf32, #tpu.memory_space<vmem>>, vector<1x8x128xf32>
      %106 = vector.shape_cast %105 : vector<1x8x128xf32> to vector<8x128xf32>
      %107 = vector.shape_cast %103 : vector<8x128xf32> to vector<1x8x128xf32>
      tpu.vector_store %arg16[%c0_51, %c0_52, %104], %107 {strides = array<i32>} : memref<1x8x384xf32, #tpu.memory_space<vmem>>, vector<1x8x128xf32>,
      %108 = tpu.iota {dimensions = array<i32: 1>} : vector<8x128xi32>
      %109 = vector.broadcast %96 : i32 to vector<8x128xi32>
      %110 = arith.addi %108, %109 : vector<8x128xi32>
      %cst_53 = arith.constant dense<0xFF800000> : vector<8xf32>
      %111 = vector.multi_reduction <maximumf>, %103, %cst_53 [1] : vector<8x128xf32> to vector<8xf32>
      %112 = vector.shape_cast %111 : vector<8xf32> to vector<8x1xf32>
      %113 = vector.broadcast %112 : vector<8x1xf32> to vector<8x128xf32>
      %114 = arith.cmpf oge, %103, %113 : vector<8x128xf32>
      %c1073741824_i32 = arith.constant 1073741824 : i32
      %115 = vector.broadcast %c1073741824_i32 : i32 to vector<8x128xi32>
      %116 = arith.select %114, %110, %115 : vector<8x128xi1>, vector<8x128xi32>
      %cst_54 = arith.constant dense<2147483647> : vector<8xi32>
      %117 = vector.multi_reduction <minsi>, %116, %cst_54 [1] : vector<8x128xi32> to vector<8xi32>
      %118 = vector.shape_cast %117 : vector<8xi32> to vector<8x1xi32>
      %119 = arith.cmpf ogt, %112, %arg21 : vector<8x1xf32>
      %120 = arith.maximumf %arg21, %112 : vector<8x1xf32>
      %121 = arith.select %119, %118, %arg22 : vector<8x1xi1>, vector<8x1xi32>
      scf.yield %120, %121 : vector<8x1xf32>, vector<8x1xi32>
    }
    %c3_i32_39 = arith.constant 3 : i32
    %80 = vector.shape_cast %79#1 : vector<8x1xi32> to vector<8x1xi32>
    %81 = vector.broadcast %80 : vector<8x1xi32> to vector<8x128xi32>
    %c0_40 = arith.constant 0 : index
    %c0_41 = arith.constant 0 : index
    %c0_42 = arith.constant 0 : index
    %82 = vector.load %arg17[%c0_40, %c0_41, %c0_42] : memref<1x8x128xi32, #tpu.memory_space<vmem>>, vector<1x8x128xi32>
    %83 = vector.shape_cast %82 : vector<1x8x128xi32> to vector<8x128xi32>
    %84 = vector.shape_cast %81 : vector<8x128xi32> to vector<1x8x128xi32>
    tpu.vector_store %arg17[%c0_40, %c0_41, %c0_42], %84 {strides = array<i32>} : memref<1x8x128xi32, #tpu.memory_space<vmem>>, vector<1x8x128xi32>,
    %85 = tpu.iota {dimensions = array<i32: 1>} : vector<8x304xi32>
    %86 = vector.broadcast %79#1 : vector<8x1xi32> to vector<8x304xi32>
    %87 = arith.cmpi eq, %85, %86 : vector<8x304xi32>
    %88 = arith.extui %87 : vector<8x304xi1> to vector<8x304xi32>
    %89 = arith.sitofp %88 : vector<8x304xi32> to vector<8x304xf32>
    %90 = arith.truncf %89 : vector<8x304xf32> to vector<8x304xbf16>
    %c0_43 = arith.constant 0 : index
    %c0_44 = arith.constant 0 : index
    %91 = vector.load %arg8[%c0_43, %c0_44] : memref<304x256xbf16, #tpu.memory_space<vmem>>, vector<304x256xbf16>
    %cst_45 = arith.constant dense<0.000000e+00> : vector<8x256xf32>
    %92 = tpu.matmul %90, %91, %cst_45 {dimension_numbers = #tpu.dot_dimension_numbers<[1], [0], [0], [1], [0, 0, 1, 1], [], []>} : vector<8x304xbf16>, vector<304x256xbf16>, vector<8x256xf32> -> vector<8x256xf32>
    %93 = arith.truncf %92 : vector<8x256xf32> to vector<8x256xbf16>
    %c0_46 = arith.constant 0 : index
    %c0_47 = arith.constant 0 : index
    %94 = vector.load %arg19[%c0_46, %c0_47] : memref<8x256xbf16, #tpu.memory_space<vmem>>, vector<8x256xbf16>
    tpu.vector_store %arg19[%c0_46, %c0_47], %93 {strides = array<i32>} : memref<8x256xbf16, #tpu.memory_space<vmem>>, vector<8x256xbf16>,
    return
  }
  func.func @transform_0(%arg0: i32, %arg1: memref<5xi32, #tpu.memory_space<smem>>) -> (i32, i32, i32) {
    %c0_i32 = arith.constant 0 : i32
    %c0_i32_0 = arith.constant 0 : i32
    %c0_i32_1 = arith.constant 0 : i32
    %c0_i32_2 = arith.constant 0 : i32
    return %c0_i32, %c0_i32_0, %c0_i32_1 : i32, i32, i32
  }
  func.func @transform_1(%arg0: i32, %arg1: memref<5xi32, #tpu.memory_space<smem>>) -> (i32, i32) {
    %c0_i32 = arith.constant 0 : i32
    %c0_i32_0 = arith.constant 0 : i32
    %c0_i32_1 = arith.constant 0 : i32
    return %c0_i32, %c0_i32_0 : i32, i32
  }
  func.func @transform_2(%arg0: i32, %arg1: memref<5xi32, #tpu.memory_space<smem>>) -> (i32, i32) {
    %c0_i32 = arith.constant 0 : i32
    %c0_i32_0 = arith.constant 0 : i32
    %c0_i32_1 = arith.constant 0 : i32
    return %c0_i32, %c0_i32_0 : i32, i32
  }
  func.func @transform_3(%arg0: i32, %arg1: memref<5xi32, #tpu.memory_space<smem>>) -> (i32, i32) {
    %c0_i32 = arith.constant 0 : i32
    %c0_i32_0 = arith.constant 0 : i32
    %c0_i32_1 = arith.constant 0 : i32
    return %c0_i32, %c0_i32_0 : i32, i32
  }
  func.func @transform_4(%arg0: i32, %arg1: memref<5xi32, #tpu.memory_space<smem>>) -> (i32, i32) {
    %c0_i32 = arith.constant 0 : i32
    %c0_i32_0 = arith.constant 0 : i32
    %c0_i32_1 = arith.constant 0 : i32
    return %c0_i32, %c0_i32_0 : i32, i32
  }
  func.func @transform_5(%arg0: i32, %arg1: memref<5xi32, #tpu.memory_space<smem>>) -> (i32, i32, i32) {
    %c0_i32 = arith.constant 0 : i32
    %c0_i32_0 = arith.constant 0 : i32
    %c0_i32_1 = arith.constant 0 : i32
    return %arg0, %c0_i32, %c0_i32_0 : i32, i32, i32
  }
  func.func @transform_6(%arg0: i32, %arg1: memref<5xi32, #tpu.memory_space<smem>>) -> (i32, i32) {
    %c0_i32 = arith.constant 0 : i32
    %c0_i32_0 = arith.constant 0 : i32
    %c0_i32_1 = arith.constant 0 : i32
    return %c0_i32, %c0_i32_0 : i32, i32
  }
  func.func @transform_7(%arg0: i32, %arg1: memref<5xi32, #tpu.memory_space<smem>>) -> (i32, i32) {
    %c0_i32 = arith.constant 0 : i32
    %c0_i32_0 = arith.constant 0 : i32
    %c0_i32_1 = arith.constant 0 : i32
    return %c0_i32, %c0_i32_0 : i32, i32
  }
  func.func @transform_8(%arg0: i32, %arg1: memref<5xi32, #tpu.memory_space<smem>>) -> (i32, i32) {
    %c0_i32 = arith.constant 0 : i32
    %c0_i32_0 = arith.constant 0 : i32
    %c0_i32_1 = arith.constant 0 : i32
    return %c0_i32, %c0_i32_0 : i32, i32
  }
  func.func @transform_9(%arg0: i32, %arg1: memref<5xi32, #tpu.memory_space<smem>>) -> (i32, i32) {
    %c0_i32 = arith.constant 0 : i32
    %c0_i32_0 = arith.constant 0 : i32
    %c0_i32_1 = arith.constant 0 : i32
    return %c0_i32, %c0_i32_0 : i32, i32
  }
  func.func @transform_10(%arg0: i32, %arg1: memref<5xi32, #tpu.memory_space<smem>>) -> (i32, i32) {
    %c0_i32 = arith.constant 0 : i32
    %c0_i32_0 = arith.constant 0 : i32
    %c0_i32_1 = arith.constant 0 : i32
    return %c0_i32, %c0_i32_0 : i32, i32
  }
  func.func @transform_11(%arg0: i32, %arg1: memref<5xi32, #tpu.memory_space<smem>>) -> (i32, i32) {
    %c0_i32 = arith.constant 0 : i32
    %c0_i32_0 = arith.constant 0 : i32
    %c0_i32_1 = arith.constant 0 : i32
    return %c0_i32, %c0_i32_0 : i32, i32
  }
  func.func @transform_12(%arg0: i32, %arg1: memref<5xi32, #tpu.memory_space<smem>>) -> (i32, i32) {
    %c0_i32 = arith.constant 0 : i32
    %c0_i32_0 = arith.constant 0 : i32
    %c0_i32_1 = arith.constant 0 : i32
    return %c0_i32, %c0_i32_0 : i32, i32
  }
  func.func @transform_13(%arg0: i32, %arg1: memref<5xi32, #tpu.memory_space<smem>>) -> (i32, i32) {
    %c0_i32 = arith.constant 0 : i32
    %c0_i32_0 = arith.constant 0 : i32
    %c0_i32_1 = arith.constant 0 : i32
    return %c0_i32, %c0_i32_0 : i32, i32
  }
  func.func @transform_14(%arg0: i32, %arg1: memref<5xi32, #tpu.memory_space<smem>>) -> (i32, i32, i32) {
    %c0_i32 = arith.constant 0 : i32
    %c0_i32_0 = arith.constant 0 : i32
    %c0_i32_1 = arith.constant 0 : i32
    return %arg0, %c0_i32, %c0_i32_0 : i32, i32, i32
  }
  func.func @transform_15(%arg0: i32, %arg1: memref<5xi32, #tpu.memory_space<smem>>) -> (i32, i32, i32) {
    %c0_i32 = arith.constant 0 : i32
    %c0_i32_0 = arith.constant 0 : i32
    %c0_i32_1 = arith.constant 0 : i32
    return %arg0, %c0_i32, %c0_i32_0 : i32, i32, i32
  }
}

</mosaic_0001>

<llo_original>
// kernel: decoder_forward.1
$region0: #{decoder_forward.1}
  #allocation0 [shape = 'u32[]', space=smem, size = 0x4, offset = 0x4, fixed_abs, tag = 'smem constant byte address 0x4 - core index']
  #allocation1 [shape = 'u32[144,128]{1,0:T(1,128)}', space=vmem, size = 0x12000, scoped, tag = 'internal scratch']
  #allocation2 [shape = 'f32[8,128]{1,0:T(8,128)}', space=vmem, size = 0x1000, scoped, tag = 'scratch operand']
  #allocation3 [shape = 'bf16[8,256]{1,0:T(8,128)(2,1)}', space=vmem, size = 0x1000, scoped, tag = 'scratch operand']
  #allocation4 [shape = 's32[1]{0}', space=sflag, size = 0x4, scoped, tag = 'scoped memory for decoder_forward.1']
  #allocation5 [shape = 'u8[512]{0}', space=smem, size = 0x200, scoped, tag = 'prefetched SMEM operand 0']
  %s0 = inlined_call_operand.hbm [shape: s32[5], index: 0, kind: input, shape index: {}]
  %s1 = inlined_call_operand.hbm [shape: f32[8,8,128], index: 1, kind: input, shape index: {}]
  %s2 = inlined_call_operand.hbm [shape: f32[8,8], index: 2, kind: input, shape index: {}]
  %s3 = inlined_call_operand.hbm [shape: f32[1,128], index: 3, kind: input, shape index: {}]
  %s4 = inlined_call_operand.hbm [shape: f32[8,128], index: 4, kind: input, shape index: {}]
  %s5 = inlined_call_operand.hbm [shape: bf16[8,256], index: 5, kind: input, shape index: {}]
  %s6 = inlined_call_operand.hbm [shape: bf16[5,8,256], index: 6, kind: input, shape index: {}]
  %s7 = inlined_call_operand.hbm [shape: bf16[304,256], index: 7, kind: input, shape index: {}]
  %s8 = inlined_call_operand.hbm [shape: bf16[256,384], index: 8, kind: input, shape index: {}]
  %s9 = inlined_call_operand.hbm [shape: bf16[128,384], index: 9, kind: input, shape index: {}]
  %s10 = inlined_call_operand.hbm [shape: bf16[128,384], index: 10, kind: input, shape index: {}]
  %s11 = inlined_call_operand.hbm [shape: f32[1,384], index: 11, kind: input, shape index: {}]
  %s12 = inlined_call_operand.hbm [shape: f32[1,384], index: 12, kind: input, shape index: {}]
  %s13 = inlined_call_operand.hbm [shape: bf16[128,384], index: 13, kind: input, shape index: {}]
  %s14 = inlined_call_operand.hbm [shape: f32[1,384], index: 14, kind: input, shape index: {}]
  %s15 = inlined_call_operand.hbm [shape: f32[5,8,384], index: 15, kind: output, shape index: {0}]
  %s16 = inlined_call_operand.hbm [shape: s32[5,8,128], index: 16, kind: output, shape index: {1}]
  %17 = xla_tuple %s15, %s16
  %s18 = sld [smem:[#allocation0]]
  $region164: #{decoder_forward.1} parent=0
    _
  %s20 = ssub.s32 1, %s18
  %s21 = scalar_select 0, %s20, %s18
  %23 = dma.hbm_to_smem %s0, 16, [#allocation5], [#allocation4]
  %24 = dma.done [#allocation4], 16
  %25 = sfence
  $region1: #{decoder_forward.1} parent=0
    #allocation6 [shape = 'u8[32768]{0}', space=vmem, size = 0x8000, scoped, tag = 'input window, operand 1, single buffered']
    #allocation7 [shape = 's32[2]{0}', space=sflag, size = 0x8, scoped, tag = 'scoped memory for decoder_forward.1']
    #allocation8 [shape = 's32[2]{0}', space=sflag, size = 0x8, scoped, tag = 'scoped memory for decoder_forward.1']
    #allocation9 [shape = 'u8[4096]{0}', space=vmem, size = 0x1000, scoped, tag = 'input window, operand 2, single buffered']
    #allocation10 [shape = 's32[1]{0}', space=sflag, size = 0x4, scoped, tag = 'scoped memory for decoder_forward.1']
    #allocation11 [shape = 'u8[512]{0}', space=vmem, size = 0x400, scoped, tag = 'input window, operand 3, single buffered']
    #allocation12 [shape = 'u8[4096]{0}', space=vmem, size = 0x1000, scoped, tag = 'input window, operand 4, single buffered']
    #allocation13 [shape = 's32[1]{0}', space=sflag, size = 0x4, scoped, tag = 'scoped memory for decoder_forward.1']
    #allocation14 [shape = 'u8[4096]{0}', space=vmem, size = 0x1000, scoped, tag = 'input window, operand 5, single buffered']
    #allocation15 [shape = 'u8[8192]{0}', space=vmem, size = 0x2000, scoped, tag = 'input window, operand 6']
    #allocation16 [shape = 's32[2]{0}', space=sflag, size = 0x8, scoped, tag = 'scoped memory for decoder_forward.1']
    #allocation17 [shape = 'u8[155648]{0}', space=vmem, size = 0x26000, scoped, tag = 'input window, operand 7, single buffered']
    #allocation18 [shape = 'u8[196608]{0}', space=vmem, size = 0x30000, scoped, tag = 'input window, operand 8, single buffered']
    #allocation19 [shape = 's32[1]{0}', space=sflag, size = 0x4, scoped, tag = 'scoped memory for decoder_forward.1']
    #allocation20 [shape = 'u8[98304]{0}', space=vmem, size = 0x18000, scoped, tag = 'input window, operand 9, single buffered']
    #allocation21 [shape = 'u8[98304]{0}', space=vmem, size = 0x18000, scoped, tag = 'input window, operand 10, single buffered']
    #allocation22 [shape = 's32[1]{0}', space=sflag, size = 0x4, scoped, tag = 'scoped memory for decoder_forward.1']
    #allocation23 [shape = 'u8[1536]{0}', space=vmem, size = 0x800, scoped, tag = 'input window, operand 11, single buffered']
    #allocation24 [shape = 'u8[1536]{0}', space=vmem, size = 0x800, scoped, tag = 'input window, operand 12, single buffered']
    #allocation25 [shape = 's32[1]{0}', space=sflag, size = 0x4, scoped, tag = 'scoped memory for decoder_forward.1']
    #allocation26 [shape = 'u8[98304]{0}', space=vmem, size = 0x18000, scoped, tag = 'input window, operand 13, single buffered']
    #allocation27 [shape = 'u8[1536]{0}', space=vmem, size = 0x800, scoped, tag = 'input window, operand 14, single buffered']
    #allocation28 [shape = 's32[1]{0}', space=sflag, size = 0x4, scoped, tag = 'scoped memory for decoder_forward.1']
    #allocation29 [shape = 'u8[24576]{0}', space=vmem, size = 0x6000, scoped, tag = 'output window, operand 0']
    #allocation30 [shape = 'u8[8192]{0}', space=vmem, size = 0x2000, scoped, tag = 'output window, operand 1']
    #allocation31 [shape = 's32[2]{0}', space=sflag, size = 0x8, scoped, tag = 'scoped memory for decoder_forward.1']
    %26 = vsyncpa [#allocation7], 0
    %27 = vsyncpa [#allocation10], 0
    %28 = vsyncpa [#allocation13], 0
    %29 = vsyncpa [#allocation16], 0
    %s30 = scalar_lea.sflag [#allocation16], 1
    %31 = vsyncpa %s30, 0
    %32 = vsyncpa [#allocation19], 0
    %33 = vsyncpa [#allocation22], 0
    %34 = vsyncpa [#allocation25], 0
    %35 = vsyncpa [#allocation28], 0
    %36 = vsyncpa [#allocation8], 0
    %s37 = scalar_lea.sflag [#allocation8], 1
    %38 = vsyncpa %s37, 0
    %39 = vsyncpa [#allocation31], 0
    %s40 = scalar_lea.sflag [#allocation31], 1
    %41 = vsyncpa %s40, 0
    loop: start=0, step=1, limit=7
    $region2: #{decoder_forward.1} parent=1 // loop_pre_header
      _
    $region3: #{decoder_forward.1} parent=1 // loop_header
      %s43 = sphi 0, %s47
      %p44 = scmp.ge.s32.totalorder %s43, 7
      %s51 = sphi 0, %s51
      %s53 = sphi 0, %s51
      %s54 = sphi 0, %s53
      %s68 = sphi 0, %s54
      %s72 = sphi 0, %s72
      %s74 = sphi 0, %s72
      %s75 = sphi 0, %s74
      %s89 = sphi 0, %s75
      %s93 = sphi 0, %s93
      %s95 = sphi 0, %s93
      %s96 = sphi 0, %s95
      %s110 = sphi 0, %s96
      %s114 = sphi 0, %s114
      %s116 = sphi 0, %s114
      %s117 = sphi 0, %s116
      %s131 = sphi 0, %s117
      %s135 = sphi 0, %s135
      %s137 = sphi 0, %s135
      %s138 = sphi 0, %s137
      %s152 = sphi 0, %s138
      %s158 = sphi 0, %s160
      %s161 = sphi 0, %s158
      %s162 = sphi 0, %s161
      %s178 = sphi 0, %s162
      %s182 = sphi 0, %s182
      %s184 = sphi 0, %s182
      %s185 = sphi 0, %s184
      %s199 = sphi 0, %s185
      %s203 = sphi 0, %s203
      %s205 = sphi 0, %s203
      %s206 = sphi 0, %s205
      %s220 = sphi 0, %s206
      %s224 = sphi 0, %s224
      %s226 = sphi 0, %s224
      %s227 = sphi 0, %s226
      %s241 = sphi 0, %s227
      %s245 = sphi 0, %s245
      %s247 = sphi 0, %s245
      %s248 = sphi 0, %s247
      %s262 = sphi 0, %s248
      %s266 = sphi 0, %s266
      %s268 = sphi 0, %s266
      %s269 = sphi 0, %s268
      %s283 = sphi 0, %s269
      %s287 = sphi 0, %s287
      %s289 = sphi 0, %s287
      %s290 = sphi 0, %s289
      %s304 = sphi 0, %s290
      %s308 = sphi 0, %s308
      %s310 = sphi 0, %s308
      %s311 = sphi 0, %s310
      %s325 = sphi 0, %s311
      %s329 = sphi 0, %s329
      %s331 = sphi 0, %s329
      %s332 = sphi 0, %s331
      %s346 = sphi 0, %s332
      %s352 = sphi 0, %s354
      %s355 = sphi 0, %s352
      %s356 = sphi 0, %s355
      %s372 = sphi 0, %s356
      %s378 = sphi 0, %s380
      %s381 = sphi 0, %s378
      %s382 = sphi 0, %s381
      %s398 = sphi 0, %s382
    $region4: #{decoder_forward.1} parent=1 // loop_header_branch
      %46 = sbr.rel (%p44) target = $region8
    $region5: #{decoder_forward.1} parent=1 // loop_body
      %s48 = ssub.s32 %s43, 1
      %s49 = ssub.s32 %s43, 2
      %s50 = sadd.s32 %s43, 1
      %s52 = sadd.s32 %s51, 1
      %p55 = scmp.eq.s32.totalorder %s43, 4
      %p56 = scmp.ne.s32.totalorder %s51, %s53
      %p57 = scmp.eq.s32.totalorder %s43, 0
      %p58 = por %p56, %p57
      %p59 = scmp.ne.s32.totalorder %s51, %s53
      %p60 = scmp.eq.s32.totalorder %s48, 4
      %p61 = por %p59, %p60
      %p62 = scmp.ne.s32.totalorder %s53, %s54
      %p63 = scmp.eq.s32.totalorder %s48, 0
      %p64 = por %p62, %p63
      %p65 = scmp.ne.s32.totalorder %s53, %s54
      %p66 = scmp.eq.s32.totalorder %s49, 4
      %p67 = por %p65, %p66
      %p69 = scmp.ne.s32.totalorder %s54, %s68
      %p70 = scmp.eq.s32.totalorder %s49, 0
      %p71 = por %p69, %p70
      %s73 = sadd.s32 %s72, 1
      %p76 = scmp.eq.s32.totalorder %s43, 4
      %p77 = scmp.ne.s32.totalorder %s72, %s74
      %p78 = scmp.eq.s32.totalorder %s43, 0
      %p79 = por %p77, %p78
      %p80 = scmp.ne.s32.totalorder %s72, %s74
      %p81 = scmp.eq.s32.totalorder %s48, 4
      %p82 = por %p80, %p81
      %p83 = scmp.ne.s32.totalorder %s74, %s75
      %p84 = scmp.eq.s32.totalorder %s48, 0
      %p85 = por %p83, %p84
      %p86 = scmp.ne.s32.totalorder %s74, %s75
      %p87 = scmp.eq.s32.totalorder %s49, 4
      %p88 = por %p86, %p87
      %p90 = scmp.ne.s32.totalorder %s75, %s89
      %p91 = scmp.eq.s32.totalorder %s49, 0
      %p92 = por %p90, %p91
      %s94 = sadd.s32 %s93, 1
      %p97 = scmp.eq.s32.totalorder %s43, 4
      %p98 = scmp.ne.s32.totalorder %s93, %s95
      %p99 = scmp.eq.s32.totalorder %s43, 0
      %p100 = por %p98, %p99
      %p101 = scmp.ne.s32.totalorder %s93, %s95
      %p102 = scmp.eq.s32.totalorder %s48, 4
      %p103 = por %p101, %p102
      %p104 = scmp.ne.s32.totalorder %s95, %s96
      %p105 = scmp.eq.s32.totalorder %s48, 0
      %p106 = por %p104, %p105
      %p107 = scmp.ne.s32.totalorder %s95, %s96
      %p108 = scmp.eq.s32.totalorder %s49, 4
      %p109 = por %p107, %p108
      %p111 = scmp.ne.s32.totalorder %s96, %s110
      %p112 = scmp.eq.s32.totalorder %s49, 0
      %p113 = por %p111, %p112
      %s115 = sadd.s32 %s114, 1
      %p118 = scmp.eq.s32.totalorder %s43, 4
      %p119 = scmp.ne.s32.totalorder %s114, %s116
      %p120 = scmp.eq.s32.totalorder %s43, 0
      %p121 = por %p119, %p120
      %p122 = scmp.ne.s32.totalorder %s114, %s116
      %p123 = scmp.eq.s32.totalorder %s48, 4
      %p124 = por %p122, %p123
      %p125 = scmp.ne.s32.totalorder %s116, %s117
      %p126 = scmp.eq.s32.totalorder %s48, 0
      %p127 = por %p125, %p126
      %p128 = scmp.ne.s32.totalorder %s116, %s117
      %p129 = scmp.eq.s32.totalorder %s49, 4
      %p130 = por %p128, %p129
      %p132 = scmp.ne.s32.totalorder %s117, %s131
      %p133 = scmp.eq.s32.totalorder %s49, 0
      %p134 = por %p132, %p133
      %s136 = sadd.s32 %s135, 1
      %p139 = scmp.eq.s32.totalorder %s43, 4
      %p140 = scmp.ne.s32.totalorder %s135, %s137
      %p141 = scmp.eq.s32.totalorder %s43, 0
      %p142 = por %p140, %p141
      %p143 = scmp.ne.s32.totalorder %s135, %s137
      %p144 = scmp.eq.s32.totalorder %s48, 4
      %p145 = por %p143, %p144
      %p146 = scmp.ne.s32.totalorder %s137, %s138
      %p147 = scmp.eq.s32.totalorder %s48, 0
      %p148 = por %p146, %p147
      %p149 = scmp.ne.s32.totalorder %s137, %s138
      %p150 = scmp.eq.s32.totalorder %s49, 4
      %p151 = por %p149, %p150
      %p153 = scmp.ne.s32.totalorder %s138, %s152
      %p154 = scmp.eq.s32.totalorder %s49, 0
      %p155 = por %p153, %p154
      %s156 = ssub.s32 %s43, %s50
      %p157 = scmp.eq.s32.totalorder %s156, 0
      %s159 = sadd.s32 %s158, 1
      %s160 = scalar_select %p157, %s158, %s159
      %p163 = pneg %p157
      %p164 = scmp.eq.s32.totalorder %s43, 4
      %p165 = por %p163, %p164
      %p166 = scmp.ne.s32.totalorder %s158, %s161
      %p167 = scmp.eq.s32.totalorder %s43, 0
      %p168 = por %p166, %p167
      %p169 = scmp.ne.s32.totalorder %s158, %s161
      %p170 = scmp.eq.s32.totalorder %s48, 4
      %p171 = por %p169, %p170
      %p172 = scmp.ne.s32.totalorder %s161, %s162
      %p173 = scmp.eq.s32.totalorder %s48, 0
      %p174 = por %p172, %p173
      %p175 = scmp.ne.s32.totalorder %s161, %s162
      %p176 = scmp.eq.s32.totalorder %s49, 4
      %p177 = por %p175, %p176
      %p179 = scmp.ne.s32.totalorder %s162, %s178
      %p180 = scmp.eq.s32.totalorder %s49, 0
      %p181 = por %p179, %p180
      %s183 = sadd.s32 %s182, 1
      %p186 = scmp.eq.s32.totalorder %s43, 4
      %p187 = scmp.ne.s32.totalorder %s182, %s184
      %p188 = scmp.eq.s32.totalorder %s43, 0
      %p189 = por %p187, %p188
      %p190 = scmp.ne.s32.totalorder %s182, %s184
      %p191 = scmp.eq.s32.totalorder %s48, 4
      %p192 = por %p190, %p191
      %p193 = scmp.ne.s32.totalorder %s184, %s185
      %p194 = scmp.eq.s32.totalorder %s48, 0
      %p195 = por %p193, %p194
      %p196 = scmp.ne.s32.totalorder %s184, %s185
      %p197 = scmp.eq.s32.totalorder %s49, 4
      %p198 = por %p196, %p197
      %p200 = scmp.ne.s32.totalorder %s185, %s199
      %p201 = scmp.eq.s32.totalorder %s49, 0
      %p202 = por %p200, %p201
      %s204 = sadd.s32 %s203, 1
      %p207 = scmp.eq.s32.totalorder %s43, 4
      %p208 = scmp.ne.s32.totalorder %s203, %s205
      %p209 = scmp.eq.s32.totalorder %s43, 0
      %p210 = por %p208, %p209
      %p211 = scmp.ne.s32.totalorder %s203, %s205
      %p212 = scmp.eq.s32.totalorder %s48, 4
      %p213 = por %p211, %p212
      %p214 = scmp.ne.s32.totalorder %s205, %s206
      %p215 = scmp.eq.s32.totalorder %s48, 0
      %p216 = por %p214, %p215
      %p217 = scmp.ne.s32.totalorder %s205, %s206
      %p218 = scmp.eq.s32.totalorder %s49, 4
      %p219 = por %p217, %p218
      %p221 = scmp.ne.s32.totalorder %s206, %s220
      %p222 = scmp.eq.s32.totalorder %s49, 0
      %p223 = por %p221, %p222
      %s225 = sadd.s32 %s224, 1
      %p228 = scmp.eq.s32.totalorder %s43, 4
      %p229 = scmp.ne.s32.totalorder %s224, %s226
      %p230 = scmp.eq.s32.totalorder %s43, 0
      %p231 = por %p229, %p230
      %p232 = scmp.ne.s32.totalorder %s224, %s226
      %p233 = scmp.eq.s32.totalorder %s48, 4
      %p234 = por %p232, %p233
      %p235 = scmp.ne.s32.totalorder %s226, %s227
      %p236 = scmp.eq.s32.totalorder %s48, 0
      %p237 = por %p235, %p236
      %p238 = scmp.ne.s32.totalorder %s226, %s227
      %p239 = scmp.eq.s32.totalorder %s49, 4
      %p240 = por %p238, %p239
      %p242 = scmp.ne.s32.totalorder %s227, %s241
      %p243 = scmp.eq.s32.totalorder %s49, 0
      %p244 = por %p242, %p243
      %s246 = sadd.s32 %s245, 1
      %p249 = scmp.eq.s32.totalorder %s43, 4
      %p250 = scmp.ne.s32.totalorder %s245, %s247
      %p251 = scmp.eq.s32.totalorder %s43, 0
      %p252 = por %p250, %p251
      %p253 = scmp.ne.s32.totalorder %s245, %s247
      %p254 = scmp.eq.s32.totalorder %s48, 4
      %p255 = por %p253, %p254
      %p256 = scmp.ne.s32.totalorder %s247, %s248
      %p257 = scmp.eq.s32.totalorder %s48, 0
      %p258 = por %p256, %p257
      %p259 = scmp.ne.s32.totalorder %s247, %s248
      %p260 = scmp.eq.s32.totalorder %s49, 4
      %p261 = por %p259, %p260
      %p263 = scmp.ne.s32.totalorder %s248, %s262
      %p264 = scmp.eq.s32.totalorder %s49, 0
      %p265 = por %p263, %p264
      %s267 = sadd.s32 %s266, 1
      %p270 = scmp.eq.s32.totalorder %s43, 4
      %p271 = scmp.ne.s32.totalorder %s266, %s268
      %p272 = scmp.eq.s32.totalorder %s43, 0
      %p273 = por %p271, %p272
      %p274 = scmp.ne.s32.totalorder %s266, %s268
      %p275 = scmp.eq.s32.totalorder %s48, 4
      %p276 = por %p274, %p275
      %p277 = scmp.ne.s32.totalorder %s268, %s269
      %p278 = scmp.eq.s32.totalorder %s48, 0
      %p279 = por %p277, %p278
      %p280 = scmp.ne.s32.totalorder %s268, %s269
      %p281 = scmp.eq.s32.totalorder %s49, 4
      %p282 = por %p280, %p281
      %p284 = scmp.ne.s32.totalorder %s269, %s283
      %p285 = scmp.eq.s32.totalorder %s49, 0
      %p286 = por %p284, %p285
      %s288 = sadd.s32 %s287, 1
      %p291 = scmp.eq.s32.totalorder %s43, 4
      %p292 = scmp.ne.s32.totalorder %s287, %s289
      %p293 = scmp.eq.s32.totalorder %s43, 0
      %p294 = por %p292, %p293
      %p295 = scmp.ne.s32.totalorder %s287, %s289
      %p296 = scmp.eq.s32.totalorder %s48, 4
      %p297 = por %p295, %p296
      %p298 = scmp.ne.s32.totalorder %s289, %s290
      %p299 = scmp.eq.s32.totalorder %s48, 0
      %p300 = por %p298, %p299
      %p301 = scmp.ne.s32.totalorder %s289, %s290
      %p302 = scmp.eq.s32.totalorder %s49, 4
      %p303 = por %p301, %p302
      %p305 = scmp.ne.s32.totalorder %s290, %s304
      %p306 = scmp.eq.s32.totalorder %s49, 0
      %p307 = por %p305, %p306
      %s309 = sadd.s32 %s308, 1
      %p312 = scmp.eq.s32.totalorder %s43, 4
      %p313 = scmp.ne.s32.totalorder %s308, %s310
      %p314 = scmp.eq.s32.totalorder %s43, 0
      %p315 = por %p313, %p314
      %p316 = scmp.ne.s32.totalorder %s308, %s310
      %p317 = scmp.eq.s32.totalorder %s48, 4
      %p318 = por %p316, %p317
      %p319 = scmp.ne.s32.totalorder %s310, %s311
      %p320 = scmp.eq.s32.totalorder %s48, 0
      %p321 = por %p319, %p320
      %p322 = scmp.ne.s32.totalorder %s310, %s311
      %p323 = scmp.eq.s32.totalorder %s49, 4
      %p324 = por %p322, %p323
      %p326 = scmp.ne.s32.totalorder %s311, %s325
      %p327 = scmp.eq.s32.totalorder %s49, 0
      %p328 = por %p326, %p327
      %s330 = sadd.s32 %s329, 1
      %p333 = scmp.eq.s32.totalorder %s43, 4
      %p334 = scmp.ne.s32.totalorder %s329, %s331
      %p335 = scmp.eq.s32.totalorder %s43, 0
      %p336 = por %p334, %p335
      %p337 = scmp.ne.s32.totalorder %s329, %s331
      %p338 = scmp.eq.s32.totalorder %s48, 4
      %p339 = por %p337, %p338
      %p340 = scmp.ne.s32.totalorder %s331, %s332
      %p341 = scmp.eq.s32.totalorder %s48, 0
      %p342 = por %p340, %p341
      %p343 = scmp.ne.s32.totalorder %s331, %s332
      %p344 = scmp.eq.s32.totalorder %s49, 4
      %p345 = por %p343, %p344
      %p347 = scmp.ne.s32.totalorder %s332, %s346
      %p348 = scmp.eq.s32.totalorder %s49, 0
      %p349 = por %p347, %p348
      %s350 = ssub.s32 %s43, %s50
      %p351 = scmp.eq.s32.totalorder %s350, 0
      %s353 = sadd.s32 %s352, 1
      %s354 = scalar_select %p351, %s352, %s353
      %p357 = pneg %p351
      %p358 = scmp.eq.s32.totalorder %s43, 4
      %p359 = por %p357, %p358
      %p360 = scmp.ne.s32.totalorder %s352, %s355
      %p361 = scmp.eq.s32.totalorder %s43, 0
      %p362 = por %p360, %p361
      %p363 = scmp.ne.s32.totalorder %s352, %s355
      %p364 = scmp.eq.s32.totalorder %s48, 4
      %p365 = por %p363, %p364
      %p366 = scmp.ne.s32.totalorder %s355, %s356
      %p367 = scmp.eq.s32.totalorder %s48, 0
      %p368 = por %p366, %p367
      %p369 = scmp.ne.s32.totalorder %s355, %s356
      %p370 = scmp.eq.s32.totalorder %s49, 4
      %p371 = por %p369, %p370
      %p373 = scmp.ne.s32.totalorder %s356, %s372
      %p374 = scmp.eq.s32.totalorder %s49, 0
      %p375 = por %p373, %p374
      %s376 = ssub.s32 %s43, %s50
      %p377 = scmp.eq.s32.totalorder %s376, 0
      %s379 = sadd.s32 %s378, 1
      %s380 = scalar_select %p377, %s378, %s379
      %p383 = pneg %p377
      %p384 = scmp.eq.s32.totalorder %s43, 4
      %p385 = por %p383, %p384
      %p386 = scmp.ne.s32.totalorder %s378, %s381
      %p387 = scmp.eq.s32.totalorder %s43, 0
      %p388 = por %p386, %p387
      %p389 = scmp.ne.s32.totalorder %s378, %s381
      %p390 = scmp.eq.s32.totalorder %s48, 4
      %p391 = por %p389, %p390
      %p392 = scmp.ne.s32.totalorder %s381, %s382
      %p393 = scmp.eq.s32.totalorder %s48, 0
      %p394 = por %p392, %p393
      %p395 = scmp.ne.s32.totalorder %s381, %s382
      %p396 = scmp.eq.s32.totalorder %s49, 4
      %p397 = por %p395, %p396
      %p399 = scmp.ne.s32.totalorder %s382, %s398
      %p400 = scmp.eq.s32.totalorder %s49, 0
      %p401 = por %p399, %p400
      %p402 = scmp.le.s32.totalorder 1, %s43
      %p403 = scmp.lt.s32.totalorder %s43, 6
      %p404 = pnand %p402, %p403
      %p405 = pneg %p404
      // Predicated region
      $region9: #{decoder_forward.1} parent=5 // pred_check
        _
      $region10: #{decoder_forward.1} parent=5 // pred_check_branch
        %407 = sbr.rel (%p404) target = $region12
      $region11: #{decoder_forward.1} parent=5 // pred_region
        %s408 = ssub.s32 %s43, 1
        // Predicated region
        $region13: #{decoder_forward.1} parent=11 // pred_check
          %p409 = pneg %p64
        $region14: #{decoder_forward.1} parent=11 // pred_check_branch
          %411 = sbr.rel (%p409) target = $region16
        $region15: #{decoder_forward.1} parent=11 // pred_region
          %s413 = ssub.s32 1024, 1024
          %414 = vsyncadd [#allocation7], %s413
          %s415 = sshll.u32 [#allocation6], 4
          %s416 = int_to_ptr.vmem [resolvable:$true] %s415
          %421 = dma.hbm_to_vmem [thread:$0]  %s1, 1024, %s416, [#allocation7], 128, 128, 8
        $region16: #{decoder_forward.1} parent=11 // pred_fallthru
          _
        // Predicated region
        $region17: #{decoder_forward.1} parent=11 // pred_check
          %p422 = pneg %p85
        $region18: #{decoder_forward.1} parent=11 // pred_check_branch
          %424 = sbr.rel (%p422) target = $region20
        $region19: #{decoder_forward.1} parent=11 // pred_region
          %s426 = ssub.s32 128, 128
          %427 = vsyncadd [#allocation10], %s426
          %s429 = sshll.u32 [#allocation9], 4
          %s430 = int_to_ptr.vmem [resolvable:$true] %s429
          %432 = dma.hbm_to_vmem [thread:$0]  %s2, 128, %s430, [#allocation10]
        $region20: #{decoder_forward.1} parent=11 // pred_fallthru
          _
        // Predicated region
        $region21: #{decoder_forward.1} parent=11 // pred_check
          %p433 = pneg %p106
        $region22: #{decoder_forward.1} parent=11 // pred_check_branch
          %435 = sbr.rel (%p433) target = $region24
        $region23: #{decoder_forward.1} parent=11 // pred_region
          %s437 = ssub.s32 16, 16
          %438 = vsyncadd [#allocation10], %s437
          %s440 = sshll.u32 [#allocation11], 4
          %s441 = int_to_ptr.vmem [resolvable:$true] %s440
          %443 = dma.hbm_to_vmem [thread:$0]  %s3, 16, %s441, [#allocation10]
        $region24: #{decoder_forward.1} parent=11 // pred_fallthru
          _
        // Predicated region
        $region25: #{decoder_forward.1} parent=11 // pred_check
          %p444 = pneg %p127
        $region26: #{decoder_forward.1} parent=11 // pred_check_branch
          %446 = sbr.rel (%p444) target = $region28
        $region27: #{decoder_forward.1} parent=11 // pred_region
          %s448 = ssub.s32 128, 128
          %449 = vsyncadd [#allocation13], %s448
          %s451 = sshll.u32 [#allocation12], 4
          %s452 = int_to_ptr.vmem [resolvable:$true] %s451
          %454 = dma.hbm_to_vmem [thread:$0]  %s4, 128, %s452, [#allocation13]
        $region28: #{decoder_forward.1} parent=11 // pred_fallthru
          _
        // Predicated region
        $region29: #{decoder_forward.1} parent=11 // pred_check
          %p455 = pneg %p148
        $region30: #{decoder_forward.1} parent=11 // pred_check_branch
          %457 = sbr.rel (%p455) target = $region32
        $region31: #{decoder_forward.1} parent=11 // pred_region
          %s459 = ssub.s32 128, 128
          %460 = vsyncadd [#allocation13], %s459
          %s462 = sshll.u32 [#allocation14], 4
          %s463 = int_to_ptr.vmem [resolvable:$true] %s462
          %465 = dma.hbm_to_vmem [thread:$0]  %s5, 128, %s463, [#allocation13]
        $region32: #{decoder_forward.1} parent=11 // pred_fallthru
          _
        // Predicated region
        $region33: #{decoder_forward.1} parent=11 // pred_check
          %p466 = pneg %p195
        $region34: #{decoder_forward.1} parent=11 // pred_check_branch
          %468 = sbr.rel (%p466) target = $region36
        $region35: #{decoder_forward.1} parent=11 // pred_region
          %s470 = ssub.s32 4864, 4864
          %471 = vsyncadd [#allocation16], %s470
          %s472 = sshll.u32 [#allocation17], 4
          %s473 = int_to_ptr.vmem [resolvable:$true] %s472
          %478 = dma.hbm_to_vmem [thread:$0]  %s7, 4864, %s473, [#allocation16], 128, 128, 8
        $region36: #{decoder_forward.1} parent=11 // pred_fallthru
          _
        // Predicated region
        $region37: #{decoder_forward.1} parent=11 // pred_check
          %p479 = pneg %p216
        $region38: #{decoder_forward.1} parent=11 // pred_check_branch
          %481 = sbr.rel (%p479) target = $region40
        $region39: #{decoder_forward.1} parent=11 // pred_region
          %s483 = ssub.s32 6144, 6144
          %484 = vsyncadd [#allocation19], %s483
          %s485 = sshll.u32 [#allocation18], 4
          %s486 = int_to_ptr.vmem [resolvable:$true] %s485
          %491 = dma.hbm_to_vmem [thread:$0]  %s8, 6144, %s486, [#allocation19], 192, 192, 12
        $region40: #{decoder_forward.1} parent=11 // pred_fallthru
          _
        // Predicated region
        $region41: #{decoder_forward.1} parent=11 // pred_check
          %p492 = pneg %p237
        $region42: #{decoder_forward.1} parent=11 // pred_check_branch
          %494 = sbr.rel (%p492) target = $region44
        $region43: #{decoder_forward.1} parent=11 // pred_region
          %s496 = ssub.s32 3072, 3072
          %497 = vsyncadd [#allocation19], %s496
          %s498 = sshll.u32 [#allocation20], 4
          %s499 = int_to_ptr.vmem [resolvable:$true] %s498
          %504 = dma.hbm_to_vmem [thread:$0]  %s9, 3072, %s499, [#allocation19], 192, 192, 12
        $region44: #{decoder_forward.1} parent=11 // pred_fallthru
          _
        // Predicated region
        $region45: #{decoder_forward.1} parent=11 // pred_check
          %p505 = pneg %p258
        $region46: #{decoder_forward.1} parent=11 // pred_check_branch
          %507 = sbr.rel (%p505) target = $region48
        $region47: #{decoder_forward.1} parent=11 // pred_region
          %s509 = ssub.s32 3072, 3072
          %510 = vsyncadd [#allocation22], %s509
          %s511 = sshll.u32 [#allocation21], 4
          %s512 = int_to_ptr.vmem [resolvable:$true] %s511
          %517 = dma.hbm_to_vmem [thread:$0]  %s10, 3072, %s512, [#allocation22], 192, 192, 12
        $region48: #{decoder_forward.1} parent=11 // pred_fallthru
          _
        // Predicated region
        $region49: #{decoder_forward.1} parent=11 // pred_check
          %p518 = pneg %p279
        $region50: #{decoder_forward.1} parent=11 // pred_check_branch
          %520 = sbr.rel (%p518) target = $region52
        $region51: #{decoder_forward.1} parent=11 // pred_region
          %s522 = ssub.s32 48, 48
          %523 = vsyncadd [#allocation22], %s522
          %s525 = sshll.u32 [#allocation23], 4
          %s526 = int_to_ptr.vmem [resolvable:$true] %s525
          %528 = dma.hbm_to_vmem [thread:$0]  %s11, 48, %s526, [#allocation22]
        $region52: #{decoder_forward.1} parent=11 // pred_fallthru
          _
        // Predicated region
        $region53: #{decoder_forward.1} parent=11 // pred_check
          %p529 = pneg %p300
        $region54: #{decoder_forward.1} parent=11 // pred_check_branch
          %531 = sbr.rel (%p529) target = $region56
        $region55: #{decoder_forward.1} parent=11 // pred_region
          %s533 = ssub.s32 48, 48
          %534 = vsyncadd [#allocation25], %s533
          %s536 = sshll.u32 [#allocation24], 4
          %s537 = int_to_ptr.vmem [resolvable:$true] %s536
          %539 = dma.hbm_to_vmem [thread:$0]  %s12, 48, %s537, [#allocation25]
        $region56: #{decoder_forward.1} parent=11 // pred_fallthru
          _
        // Predicated region
        $region57: #{decoder_forward.1} parent=11 // pred_check
          %p540 = pneg %p321
        $region58: #{decoder_forward.1} parent=11 // pred_check_branch
          %542 = sbr.rel (%p540) target = $region60
        $region59: #{decoder_forward.1} parent=11 // pred_region
          %s544 = ssub.s32 3072, 3072
          %545 = vsyncadd [#allocation25], %s544
          %s546 = sshll.u32 [#allocation26], 4
          %s547 = int_to_ptr.vmem [resolvable:$true] %s546
          %552 = dma.hbm_to_vmem [thread:$0]  %s13, 3072, %s547, [#allocation25], 192, 192, 12
        $region60: #{decoder_forward.1} parent=11 // pred_fallthru
          _
        // Predicated region
        $region61: #{decoder_forward.1} parent=11 // pred_check
          %p553 = pneg %p342
        $region62: #{decoder_forward.1} parent=11 // pred_check_branch
          %555 = sbr.rel (%p553) target = $region64
        $region63: #{decoder_forward.1} parent=11 // pred_region
          %s557 = ssub.s32 48, 48
          %558 = vsyncadd [#allocation28], %s557
          %s560 = sshll.u32 [#allocation27], 4
          %s561 = int_to_ptr.vmem [resolvable:$true] %s560
          %563 = dma.hbm_to_vmem [thread:$0]  %s14, 48, %s561, [#allocation28]
        $region64: #{decoder_forward.1} parent=11 // pred_fallthru
          _
      $region12: #{decoder_forward.1} parent=5 // pred_fallthru
        _
      %p564 = scmp.lt.s32.totalorder %s43, 5
      // Predicated region
      $region65: #{decoder_forward.1} parent=5 // pred_check
        %p565 = pneg %p564
      $region66: #{decoder_forward.1} parent=5 // pred_check_branch
        %567 = sbr.rel (%p565) target = $region68
      $region67: #{decoder_forward.1} parent=5 // pred_region
        // Predicated region
        $region69: #{decoder_forward.1} parent=67 // pred_check
          %p568 = pneg %p168
        $region70: #{decoder_forward.1} parent=67 // pred_check_branch
          %570 = sbr.rel (%p568) target = $region72
        $region71: #{decoder_forward.1} parent=67 // pred_region
          %s571 = sand.u32 %s43, 1
          %s572 = scalar_lea.sflag [#allocation16], %s571
          %s573 = sand.u32 %s158, 1
          %s574 = smul.addr %s573, 8
          %s575 = scalar_lea.vmem [#allocation15], %s574
          %s577 = ssub.s32 128, 128
          %578 = vsyncadd %s572, %s577
          %s579 = smul.addr %s43, 2
          %s580 = smul.addr %s579, 64
          %s581 = scalar_lea.hbm %s6, %s580
          %s583 = sshll.u32 %s575, 4
          %s584 = int_to_ptr.vmem [resolvable:$true] %s583
          %586 = dma.hbm_to_vmem [thread:$0]  %s581, 128, %s584, %s572
        $region72: #{decoder_forward.1} parent=67 // pred_fallthru
          _
      $region68: #{decoder_forward.1} parent=5 // pred_fallthru
        _
      %p587 = scmp.le.s32.totalorder 1, %s43
      %p588 = scmp.lt.s32.totalorder %s43, 6
      %p589 = pnand %p587, %p588
      %p590 = pneg %p589
      // Predicated region
      $region73: #{decoder_forward.1} parent=5 // pred_check
        _
      $region74: #{decoder_forward.1} parent=5 // pred_check_branch
        %592 = sbr.rel (%p589) target = $region76
      $region75: #{decoder_forward.1} parent=5 // pred_region
        %s593 = ssub.s32 %s43, 1
        // Predicated region
        $region77: #{decoder_forward.1} parent=75 // pred_check
          %p594 = pneg %p64
        $region78: #{decoder_forward.1} parent=75 // pred_check_branch
          %596 = sbr.rel (%p594) target = $region80
        $region79: #{decoder_forward.1} parent=75 // pred_region
          %597 = dma.done [#allocation7], 1024
        $region80: #{decoder_forward.1} parent=75 // pred_fallthru
          _
        // Predicated region
        $region81: #{decoder_forward.1} parent=75 // pred_check
          %p598 = pneg %p85
        $region82: #{decoder_forward.1} parent=75 // pred_check_branch
          %600 = sbr.rel (%p598) target = $region84
        $region83: #{decoder_forward.1} parent=75 // pred_region
          %601 = dma.done [#allocation10], 128
        $region84: #{decoder_forward.1} parent=75 // pred_fallthru
          _
        // Predicated region
        $region85: #{decoder_forward.1} parent=75 // pred_check
          %p602 = pneg %p106
        $region86: #{decoder_forward.1} parent=75 // pred_check_branch
          %604 = sbr.rel (%p602) target = $region88
        $region87: #{decoder_forward.1} parent=75 // pred_region
          %605 = dma.done [#allocation10], 16
        $region88: #{decoder_forward.1} parent=75 // pred_fallthru
          _
        // Predicated region
        $region89: #{decoder_forward.1} parent=75 // pred_check
          %p606 = pneg %p127
        $region90: #{decoder_forward.1} parent=75 // pred_check_branch
          %608 = sbr.rel (%p606) target = $region92
        $region91: #{decoder_forward.1} parent=75 // pred_region
          %609 = dma.done [#allocation13], 128
        $region92: #{decoder_forward.1} parent=75 // pred_fallthru
          _
        // Predicated region
        $region93: #{decoder_forward.1} parent=75 // pred_check
          %p610 = pneg %p148
        $region94: #{decoder_forward.1} parent=75 // pred_check_branch
          %612 = sbr.rel (%p610) target = $region96
        $region95: #{decoder_forward.1} parent=75 // pred_region
          %613 = dma.done [#allocation13], 128
        $region96: #{decoder_forward.1} parent=75 // pred_fallthru
          _
        %s614 = sand.u32 %s48, 1
        %s615 = scalar_lea.sflag [#allocation16], %s614
        %s616 = sand.u32 %s161, 1
        %s617 = smul.addr %s616, 8
        %s618 = scalar_lea.vmem [#allocation15], %s617
        // Predicated region
        $region97: #{decoder_forward.1} parent=75 // pred_check
          %p619 = pneg %p174
        $region98: #{decoder_forward.1} parent=75 // pred_check_branch
          %621 = sbr.rel (%p619) target = $region100
        $region99: #{decoder_forward.1} parent=75 // pred_region
          %622 = dma.done %s615, 128
        $region100: #{decoder_forward.1} parent=75 // pred_fallthru
          _
        // Predicated region
        $region101: #{decoder_forward.1} parent=75 // pred_check
          %p623 = pneg %p195
        $region102: #{decoder_forward.1} parent=75 // pred_check_branch
          %625 = sbr.rel (%p623) target = $region104
        $region103: #{decoder_forward.1} parent=75 // pred_region
          %626 = dma.done [#allocation16], 4864
        $region104: #{decoder_forward.1} parent=75 // pred_fallthru
          _
        // Predicated region
        $region105: #{decoder_forward.1} parent=75 // pred_check
          %p627 = pneg %p216
        $region106: #{decoder_forward.1} parent=75 // pred_check_branch
          %629 = sbr.rel (%p627) target = $region108
        $region107: #{decoder_forward.1} parent=75 // pred_region
          %630 = dma.done [#allocation19], 6144
        $region108: #{decoder_forward.1} parent=75 // pred_fallthru
          _
        // Predicated region
        $region109: #{decoder_forward.1} parent=75 // pred_check
          %p631 = pneg %p237
        $region110: #{decoder_forward.1} parent=75 // pred_check_branch
          %633 = sbr.rel (%p631) target = $region112
        $region111: #{decoder_forward.1} parent=75 // pred_region
          %634 = dma.done [#allocation19], 3072
        $region112: #{decoder_forward.1} parent=75 // pred_fallthru
          _
        // Predicated region
        $region113: #{decoder_forward.1} parent=75 // pred_check
          %p635 = pneg %p258
        $region114: #{decoder_forward.1} parent=75 // pred_check_branch
          %637 = sbr.rel (%p635) target = $region116
        $region115: #{decoder_forward.1} parent=75 // pred_region
          %638 = dma.done [#allocation22], 3072
        $region116: #{decoder_forward.1} parent=75 // pred_fallthru
          _
        // Predicated region
        $region117: #{decoder_forward.1} parent=75 // pred_check
          %p639 = pneg %p279
        $region118: #{decoder_forward.1} parent=75 // pred_check_branch
          %641 = sbr.rel (%p639) target = $region120
        $region119: #{decoder_forward.1} parent=75 // pred_region
          %642 = dma.done [#allocation22], 48
        $region120: #{decoder_forward.1} parent=75 // pred_fallthru
          _
        // Predicated region
        $region121: #{decoder_forward.1} parent=75 // pred_check
          %p643 = pneg %p300
        $region122: #{decoder_forward.1} parent=75 // pred_check_branch
          %645 = sbr.rel (%p643) target = $region124
        $region123: #{decoder_forward.1} parent=75 // pred_region
          %646 = dma.done [#allocation25], 48
        $region124: #{decoder_forward.1} parent=75 // pred_fallthru
          _
        // Predicated region
        $region125: #{decoder_forward.1} parent=75 // pred_check
          %p647 = pneg %p321
        $region126: #{decoder_forward.1} parent=75 // pred_check_branch
          %649 = sbr.rel (%p647) target = $region128
        $region127: #{decoder_forward.1} parent=75 // pred_region
          %650 = dma.done [#allocation25], 3072
        $region128: #{decoder_forward.1} parent=75 // pred_fallthru
          _
        // Predicated region
        $region129: #{decoder_forward.1} parent=75 // pred_check
          %p651 = pneg %p342
        $region130: #{decoder_forward.1} parent=75 // pred_check_branch
          %653 = sbr.rel (%p651) target = $region132
        $region131: #{decoder_forward.1} parent=75 // pred_region
          %654 = dma.done [#allocation28], 48
        $region132: #{decoder_forward.1} parent=75 // pred_fallthru
          _
        %p655 = pneg %p64
        %p656 = pneg %p61
        %p657 = pneg %p85
        %p658 = pneg %p82
        %p659 = pneg %p106
        %p660 = pneg %p103
        %p661 = pneg %p127
        %p662 = pneg %p124
        %p663 = pneg %p148
        %p664 = pneg %p145
        %s665 = sand.u32 %s48, 1
        %s666 = scalar_lea.sflag [#allocation16], %s665
        %s667 = sand.u32 %s161, 1
        %s668 = smul.addr %s667, 8
        %s669 = scalar_lea.vmem [#allocation15], %s668
        %p670 = pneg %p174
        %p671 = pneg %p171
        %p672 = pneg %p195
        %p673 = pneg %p192
        %p674 = pneg %p216
        %p675 = pneg %p213
        %p676 = pneg %p237
        %p677 = pneg %p234
        %p678 = pneg %p258
        %p679 = pneg %p255
        %p680 = pneg %p279
        %p681 = pneg %p276
        %p682 = pneg %p300
        %p683 = pneg %p297
        %p684 = pneg %p321
        %p685 = pneg %p318
        %p686 = pneg %p342
        %p687 = pneg %p339
        %p688 = pneg %p368
        %p689 = pneg %p365
        %s690 = sand.u32 %s355, 1
        %s691 = scalar_lea.sflag [#allocation8], %s690
        %s692 = sand.u32 %s355, 1
        %s693 = smul.addr %s692, 24
        %s694 = scalar_lea.vmem [#allocation29], %s693
        %p695 = pneg %p394
        %p696 = pneg %p391
        %s697 = sand.u32 %s381, 1
        %s698 = scalar_lea.sflag [#allocation31], %s697
        %s699 = sand.u32 %s381, 1
        %s700 = smul.addr %s699, 8
        %s701 = scalar_lea.vmem [#allocation30], %s700
        %p703 = scmp.eq.s32.totalorder %s48, 0
        // Predicated region
        $region133: #{decoder_forward.1} parent=75 // pred_check
          %p704 = pneg %p703
        $region134: #{decoder_forward.1} parent=75 // pred_check_branch
          %706 = sbr.rel (%p704) target = $region136
        $region135: #{decoder_forward.1} parent=75 // pred_region
          %v707 = vld [vmem:[#allocation12] sm:$0xff]
          %708 = vst [vmem:[#allocation2] sm:$0xff] %v707
          %v709 = vld [vmem:[#allocation14] sm:$0xff]
          %710 = vst [vmem:[#allocation3] sm:$0xff] %v709
        $region136: #{decoder_forward.1} parent=75 // pred_fallthru
          _
        %v711 = vld [vmem:[#allocation2] sm:$0xff]
        %s712 = sld [smem:[#allocation5 + %s48]]
        %p713 = scmp.eq.s32.totalorder %s712, 1
        %v714 = vld [vmem:[%s618] sm:$0xff]
        %v715 = vld [vmem:[#allocation3] sm:$0xff]
        %s716 = scalar_select %p713, 1, 0
        %v717 = vstv %s716
        %vm718 = vcmp.eq.s32.totalorder %v717, 1
        %v719 = vsel %vm718, %v714, %v715
        %v720 = vld [vmem:[#allocation11] sm:$0x1]
        %v722 = vlaneseq
        %v723 = vshrl.u32 %v722, 7
        %v724 = vsub.s32 0, %v723
        %v725 = vrot.slane %v720, %v724
        %v727 = vmul.f32 %v711, %v725
        %728 = vadd.xlane.f32.xlu0 %v727
        %v729 = vpop.xlane.xlu0 %728
        %v730 = vld [vmem:[#allocation9] sm:$0xff]
        %v731 = vadd.f32 %v730, %v729
        %vm732 = vcmask 64512
        %v733 = vsel %vm732, %v731, -inf
        %734 = vmax.xlane.f32.xlu0 %v733
        %v735 = vpop.xlane.xlu0 %734
        %v736 = vsub.f32 %v731, %v735
        %v737 = vmul.f32 %v736, 1.442695
        %v738 = vpow.pop %v737
        %v739 = vsel %vm732, %v738, 0.0
        %740 = vadd.xlane.f32.xlu0 %v739
        %v741 = vpop.xlane.xlu0 %740
        %v742 = vrcp.pop %v741
        %v743 = vmul.f32 %v738, %v742
        %v744 = vlaneseq
        %v745 = vshrl.u32 %v744, 7
        %v746 = vsub.s32 0, %v745
        %v747 = vrot.slane %v743, %v746
        %749 = vbcast.lane.b32.xlu0 %v747, 256
        %v750 = vpop.permute.xlu0 %749
        %v751 = vlaneseq
        %v752 = vshrl.u32 %v751, 7
        %v753 = vsub.s32 1, %v752
        %v754 = vrot.slane %v743, %v753
        %756 = vbcast.lane.b32.xlu0 %v754, 256
        %v757 = vpop.permute.xlu0 %756
        %v758 = vlaneseq
        %v759 = vshrl.u32 %v758, 7
        %v760 = vsub.s32 2, %v759
        %v761 = vrot.slane %v743, %v760
        %763 = vbcast.lane.b32.xlu0 %v761, 256
        %v764 = vpop.permute.xlu0 %763
        %v765 = vlaneseq
        %v766 = vshrl.u32 %v765, 7
        %v767 = vsub.s32 3, %v766
        %v768 = vrot.slane %v743, %v767
        %770 = vbcast.lane.b32.xlu0 %v768, 256
        %v771 = vpop.permute.xlu0 %770
        %v772 = vlaneseq
        %v773 = vshrl.u32 %v772, 7
        %v774 = vsub.s32 4, %v773
        %v775 = vrot.slane %v743, %v774
        %777 = vbcast.lane.b32.xlu0 %v775, 256
        %v778 = vpop.permute.xlu0 %777
        %v779 = vlaneseq
        %v780 = vshrl.u32 %v779, 7
        %v781 = vsub.s32 5, %v780
        %v782 = vrot.slane %v743, %v781
        %784 = vbcast.lane.b32.xlu0 %v782, 256
        %v785 = vpop.permute.xlu0 %784
        %v786 = vlaneseq
        %v787 = vshrl.u32 %v786, 7
        %v788 = vsub.s32 6, %v787
        %v789 = vrot.slane %v743, %v788
        %791 = vbcast.lane.b32.xlu0 %v789, 256
        %v792 = vpop.permute.xlu0 %791
        %v793 = vlaneseq
        %v794 = vshrl.u32 %v793, 7
        %v795 = vsub.s32 7, %v794
        %v796 = vrot.slane %v743, %v795
        %798 = vbcast.lane.b32.xlu0 %v796, 256
        %v799 = vpop.permute.xlu0 %798
        %v800 = vld [vmem:[#allocation6] sm:$0xff]
        %v801 = vld [vmem:[#allocation6 + $0x8] sm:$0xff]
        %v802 = vld [vmem:[#allocation6 + $0x10] sm:$0xff]
        %v803 = vld [vmem:[#allocation6 + $0x18] sm:$0xff]
        %v804 = vld [vmem:[#allocation6 + $0x20] sm:$0xff]
        %v805 = vld [vmem:[#allocation6 + $0x28] sm:$0xff]
        %v806 = vld [vmem:[#allocation6 + $0x30] sm:$0xff]
        %v807 = vld [vmem:[#allocation6 + $0x38] sm:$0xff]
        %v808 = vmul.f32 %v750, %v800
        %v809 = vmul.f32 %v757, %v801
        %v810 = vmul.f32 %v764, %v802
        %v811 = vmul.f32 %v771, %v803
        %v812 = vmul.f32 %v778, %v804
        %v813 = vmul.f32 %v785, %v805
        %v814 = vmul.f32 %v792, %v806
        %v815 = vmul.f32 %v799, %v807
        %v816 = vrot.slane %v808, 4
        %v817 = vadd.f32 %v808, %v816
        %v818 = vrot.slane %v817, 2
        %v819 = vadd.f32 %v817, %v818
        %v820 = vrot.slane %v819, 1
        %v821 = vadd.f32 %v819, %v820
        %v822 = vrot.slane %v809, 4
        %v823 = vadd.f32 %v809, %v822
        %v824 = vrot.slane %v823, 2
        %v825 = vadd.f32 %v823, %v824
        %v826 = vrot.slane %v825, 1
        %v827 = vadd.f32 %v825, %v826
        %v828 = vrot.slane %v810, 4
        %v829 = vadd.f32 %v810, %v828
        %v830 = vrot.slane %v829, 2
        %v831 = vadd.f32 %v829, %v830
        %v832 = vrot.slane %v831, 1
        %v833 = vadd.f32 %v831, %v832
        %v834 = vrot.slane %v811, 4
        %v835 = vadd.f32 %v811, %v834
        %v836 = vrot.slane %v835, 2
        %v837 = vadd.f32 %v835, %v836
        %v838 = vrot.slane %v837, 1
        %v839 = vadd.f32 %v837, %v838
        %v840 = vrot.slane %v812, 4
        %v841 = vadd.f32 %v812, %v840
        %v842 = vrot.slane %v841, 2
        %v843 = vadd.f32 %v841, %v842
        %v844 = vrot.slane %v843, 1
        %v845 = vadd.f32 %v843, %v844
        %v846 = vrot.slane %v813, 4
        %v847 = vadd.f32 %v813, %v846
        %v848 = vrot.slane %v847, 2
        %v849 = vadd.f32 %v847, %v848
        %v850 = vrot.slane %v849, 1
        %v851 = vadd.f32 %v849, %v850
        %v852 = vrot.slane %v814, 4
        %v853 = vadd.f32 %v814, %v852
        %v854 = vrot.slane %v853, 2
        %v855 = vadd.f32 %v853, %v854
        %v856 = vrot.slane %v855, 1
        %v857 = vadd.f32 %v855, %v856
        %v858 = vrot.slane %v815, 4
        %v859 = vadd.f32 %v815, %v858
        %v860 = vrot.slane %v859, 2
        %v861 = vadd.f32 %v859, %v860
        %v862 = vrot.slane %v861, 1
        %v863 = vadd.f32 %v861, %v862
        %v864 = vpack.c.bf16 %v711, %v711
        %v865 = vpack.c.bf16 %v821, %v821
        %v866 = vpack.c.bf16 %v827, %v827
        %v867 = vpack.c.bf16 %v833, %v833
        %v868 = vpack.c.bf16 %v839, %v839
        %v869 = vpack.c.bf16 %v845, %v845
        %v870 = vpack.c.bf16 %v851, %v851
        %v871 = vpack.c.bf16 %v857, %v857
        %v872 = vpack.c.bf16 %v863, %v863
        %v873 = vld [vmem:[#allocation18] sm:$0xff]
        %v874 = vld [vmem:[#allocation18 + $0x8] sm:$0xf]
        %v875 = vld [vmem:[#allocation18 + $0xc] sm:$0xff]
        %v876 = vld [vmem:[#allocation18 + $0x14] sm:$0xf]
        %v877 = vld [vmem:[#allocation18 + $0x18] sm:$0xff]
        %v878 = vld [vmem:[#allocation18 + $0x20] sm:$0xf]
        %v879 = vld [vmem:[#allocation18 + $0x24] sm:$0xff]
        %v880 = vld [vmem:[#allocation18 + $0x2c] sm:$0xf]
        %v881 = vld [vmem:[#allocation18 + $0x30] sm:$0xff]
        %v882 = vld [vmem:[#allocation18 + $0x38] sm:$0xf]
        %v883 = vld [vmem:[#allocation18 + $0x3c] sm:$0xff]
        %v884 = vld [vmem:[#allocation18 + $0x44] sm:$0xf]
        %v885 = vld [vmem:[#allocation18 + $0x48] sm:$0xff]
        %v886 = vld [vmem:[#allocation18 + $0x50] sm:$0xf]
        %v887 = vld [vmem:[#allocation18 + $0x54] sm:$0xff]
        %v888 = vld [vmem:[#allocation18 + $0x5c] sm:$0xf]
        %v889 = vld [vmem:[#allocation18 + $0x60] sm:$0xff]
        %v890 = vld [vmem:[#allocation18 + $0x68] sm:$0xf]
        %v891 = vld [vmem:[#allocation18 + $0x6c] sm:$0xff]
        %v892 = vld [vmem:[#allocation18 + $0x74] sm:$0xf]
        %v893 = vld [vmem:[#allocation18 + $0x78] sm:$0xff]
        %v894 = vld [vmem:[#allocation18 + $0x80] sm:$0xf]
        %v895 = vld [vmem:[#allocation18 + $0x84] sm:$0xff]
        %v896 = vld [vmem:[#allocation18 + $0x8c] sm:$0xf]
        %v897 = vld [vmem:[#allocation18 + $0x90] sm:$0xff]
        %v898 = vld [vmem:[#allocation18 + $0x98] sm:$0xf]
        %v899 = vld [vmem:[#allocation18 + $0x9c] sm:$0xff]
        %v900 = vld [vmem:[#allocation18 + $0xa4] sm:$0xf]
        %v901 = vld [vmem:[#allocation18 + $0xa8] sm:$0xff]
        %v902 = vld [vmem:[#allocation18 + $0xb0] sm:$0xf]
        %v903 = vld [vmem:[#allocation18 + $0xb4] sm:$0xff]
        %v904 = vld [vmem:[#allocation18 + $0xbc] sm:$0xf]
        %v905 = vld [vmem:[#allocation18 + $0xc0] sm:$0xff]
        %v906 = vld [vmem:[#allocation18 + $0xc8] sm:$0xf]
        %v907 = vld [vmem:[#allocation18 + $0xcc] sm:$0xff]
        %v908 = vld [vmem:[#allocation18 + $0xd4] sm:$0xf]
        %v909 = vld [vmem:[#allocation18 + $0xd8] sm:$0xff]
        %v910 = vld [vmem:[#allocation18 + $0xe0] sm:$0xf]
        %v911 = vld [vmem:[#allocation18 + $0xe4] sm:$0xff]
        %v912 = vld [vmem:[#allocation18 + $0xec] sm:$0xf]
        %v913 = vld [vmem:[#allocation18 + $0xf0] sm:$0xff]
        %v914 = vld [vmem:[#allocation18 + $0xf8] sm:$0xf]
        %v915 = vld [vmem:[#allocation18 + $0xfc] sm:$0xff]
        %v916 = vld [vmem:[#allocation18 + $0x104] sm:$0xf]
        %v917 = vld [vmem:[#allocation18 + $0x108] sm:$0xff]
        %v918 = vld [vmem:[#allocation18 + $0x110] sm:$0xf]
        %v919 = vld [vmem:[#allocation18 + $0x114] sm:$0xff]
        %v920 = vld [vmem:[#allocation18 + $0x11c] sm:$0xf]
        %v921 = vld [vmem:[#allocation18 + $0x120] sm:$0xff]
        %v922 = vld [vmem:[#allocation18 + $0x128] sm:$0xf]
        %v923 = vld [vmem:[#allocation18 + $0x12c] sm:$0xff]
        %v924 = vld [vmem:[#allocation18 + $0x134] sm:$0xf]
        %v925 = vld [vmem:[#allocation18 + $0x138] sm:$0xff]
        %v926 = vld [vmem:[#allocation18 + $0x140] sm:$0xf]
        %v927 = vld [vmem:[#allocation18 + $0x144] sm:$0xff]
        %v928 = vld [vmem:[#allocation18 + $0x14c] sm:$0xf]
        %v929 = vld [vmem:[#allocation18 + $0x150] sm:$0xff]
        %v930 = vld [vmem:[#allocation18 + $0x158] sm:$0xf]
        %v931 = vld [vmem:[#allocation18 + $0x15c] sm:$0xff]
        %v932 = vld [vmem:[#allocation18 + $0x164] sm:$0xf]
        %v933 = vld [vmem:[#allocation18 + $0x168] sm:$0xff]
        %v934 = vld [vmem:[#allocation18 + $0x170] sm:$0xf]
        %v935 = vld [vmem:[#allocation18 + $0x174] sm:$0xff]
        %v936 = vld [vmem:[#allocation18 + $0x17c] sm:$0xf]
        %v937 = vld [vmem:[#allocation20] sm:$0xff]
        %v938 = vld [vmem:[#allocation20 + $0x8] sm:$0xf]
        %v939 = vld [vmem:[#allocation20 + $0xc] sm:$0xff]
        %v940 = vld [vmem:[#allocation20 + $0x14] sm:$0xf]
        %v941 = vld [vmem:[#allocation20 + $0x18] sm:$0xff]
        %v942 = vld [vmem:[#allocation20 + $0x20] sm:$0xf]
        %v943 = vld [vmem:[#allocation20 + $0x24] sm:$0xff]
        %v944 = vld [vmem:[#allocation20 + $0x2c] sm:$0xf]
        %v945 = vld [vmem:[#allocation20 + $0x30] sm:$0xff]
        %v946 = vld [vmem:[#allocation20 + $0x38] sm:$0xf]
        %v947 = vld [vmem:[#allocation20 + $0x3c] sm:$0xff]
        %v948 = vld [vmem:[#allocation20 + $0x44] sm:$0xf]
        %v949 = vld [vmem:[#allocation20 + $0x48] sm:$0xff]
        %v950 = vld [vmem:[#allocation20 + $0x50] sm:$0xf]
        %v951 = vld [vmem:[#allocation20 + $0x54] sm:$0xff]
        %v952 = vld [vmem:[#allocation20 + $0x5c] sm:$0xf]
        %v953 = vld [vmem:[#allocation20 + $0x60] sm:$0xff]
        %v954 = vld [vmem:[#allocation20 + $0x68] sm:$0xf]
        %v955 = vld [vmem:[#allocation20 + $0x6c] sm:$0xff]
        %v956 = vld [vmem:[#allocation20 + $0x74] sm:$0xf]
        %v957 = vld [vmem:[#allocation20 + $0x78] sm:$0xff]
        %v958 = vld [vmem:[#allocation20 + $0x80] sm:$0xf]
        %v959 = vld [vmem:[#allocation20 + $0x84] sm:$0xff]
        %v960 = vld [vmem:[#allocation20 + $0x8c] sm:$0xf]
        %v961 = vld [vmem:[#allocation20 + $0x90] sm:$0xff]
        %v962 = vld [vmem:[#allocation20 + $0x98] sm:$0xf]
        %v963 = vld [vmem:[#allocation20 + $0x9c] sm:$0xff]
        %v964 = vld [vmem:[#allocation20 + $0xa4] sm:$0xf]
        %v965 = vld [vmem:[#allocation20 + $0xa8] sm:$0xff]
        %v966 = vld [vmem:[#allocation20 + $0xb0] sm:$0xf]
        %v967 = vld [vmem:[#allocation20 + $0xb4] sm:$0xff]
        %v968 = vld [vmem:[#allocation20 + $0xbc] sm:$0xf]
        %v977 = vunpack.c.l.b16 %v865
        %v978 = vunpack.c.l.b16 %v866
        %v979 = vunpack.c.l.b16 %v867
        %v980 = vunpack.c.l.b16 %v868
        %v981 = vunpack.c.l.b16 %v869
        %v982 = vunpack.c.l.b16 %v870
        %v983 = vunpack.c.l.b16 %v871
        %v984 = vunpack.c.l.b16 %v872
        %vm985 = vcmask 1041409
        %v986 = vsel %vm985, %v978, %v977
        %vm987 = vcmask 1042434
        %v988 = vsel %vm987, %v979, %v986
        %vm989 = vcmask 1043459
        %v990 = vsel %vm989, %v980, %v988
        %vm991 = vcmask 1044484
        %v992 = vsel %vm991, %v981, %v990
        %vm993 = vcmask 1045509
        %v994 = vsel %vm993, %v982, %v992
        %vm995 = vcmask 1046534
        %v996 = vsel %vm995, %v983, %v994
        %vm997 = vcmask 1047559
        %v998 = vsel %vm997, %v984, %v996
        %v999 = vpack.c.b16 %v998, %v998
        %v1033 = vunpack.c.l.b16 %v937
        %v1034 = vunpack.c.h.b16 %v937
        %v1035 = vunpack.c.l.b16 %v938
        %v1036 = vunpack.c.l.b16 %v939
        %v1037 = vunpack.c.h.b16 %v939
        %v1038 = vunpack.c.l.b16 %v940
        %v1039 = vunpack.c.l.b16 %v941
        %v1040 = vunpack.c.h.b16 %v941
        %v1041 = vunpack.c.l.b16 %v942
        %v1042 = vunpack.c.l.b16 %v943
        %v1043 = vunpack.c.h.b16 %v943
        %v1044 = vunpack.c.l.b16 %v944
        %v1045 = vunpack.c.l.b16 %v945
        %v1046 = vunpack.c.h.b16 %v945
        %v1047 = vunpack.c.l.b16 %v946
        %v1048 = vunpack.c.l.b16 %v947
        %v1049 = vunpack.c.h.b16 %v947
        %v1050 = vunpack.c.l.b16 %v948
        %v1051 = vunpack.c.l.b16 %v949
        %v1052 = vunpack.c.h.b16 %v949
        %v1053 = vunpack.c.l.b16 %v950
        %v1054 = vunpack.c.l.b16 %v951
        %v1055 = vunpack.c.h.b16 %v951
        %v1056 = vunpack.c.l.b16 %v952
        %v1057 = vunpack.c.l.b16 %v953
        %v1058 = vunpack.c.h.b16 %v953
        %v1059 = vunpack.c.l.b16 %v954
        %v1060 = vunpack.c.l.b16 %v955
        %v1061 = vunpack.c.h.b16 %v955
        %v1062 = vunpack.c.l.b16 %v956
        %v1063 = vunpack.c.l.b16 %v957
        %v1064 = vunpack.c.h.b16 %v957
        %v1065 = vunpack.c.l.b16 %v958
        %v1066 = vunpack.c.l.b16 %v959
        %v1067 = vunpack.c.h.b16 %v959
        %v1068 = vunpack.c.l.b16 %v960
        %v1069 = vunpack.c.l.b16 %v961
        %v1070 = vunpack.c.h.b16 %v961
        %v1071 = vunpack.c.l.b16 %v962
        %v1072 = vunpack.c.l.b16 %v963
        %v1073 = vunpack.c.h.b16 %v963
        %v1074 = vunpack.c.l.b16 %v964
        %v1075 = vunpack.c.l.b16 %v965
        %v1076 = vunpack.c.h.b16 %v965
        %v1077 = vunpack.c.l.b16 %v966
        %v1078 = vunpack.c.l.b16 %v967
        %v1079 = vunpack.c.h.b16 %v967
        %v1080 = vunpack.c.l.b16 %v968
        %v1081 = vpack.c.b16 %v1036, %v1033
        %v1082 = vpack.c.b16 %v1037, %v1034
        %v1083 = vpack.c.b16 %v1038, %v1035
        %v1084 = vpack.c.b16 %v1042, %v1039
        %v1085 = vpack.c.b16 %v1043, %v1040
        %v1086 = vpack.c.b16 %v1044, %v1041
        %v1087 = vpack.c.b16 %v1048, %v1045
        %v1088 = vpack.c.b16 %v1049, %v1046
        %v1089 = vpack.c.b16 %v1050, %v1047
        %v1090 = vpack.c.b16 %v1054, %v1051
        %v1091 = vpack.c.b16 %v1055, %v1052
        %v1092 = vpack.c.b16 %v1056, %v1053
        %v1093 = vpack.c.b16 %v1060, %v1057
        %v1094 = vpack.c.b16 %v1061, %v1058
        %v1095 = vpack.c.b16 %v1062, %v1059
        %v1096 = vpack.c.b16 %v1066, %v1063
        %v1097 = vpack.c.b16 %v1067, %v1064
        %v1098 = vpack.c.b16 %v1068, %v1065
        %v1099 = vpack.c.b16 %v1072, %v1069
        %v1100 = vpack.c.b16 %v1073, %v1070
        %v1101 = vpack.c.b16 %v1074, %v1071
        %v1102 = vpack.c.b16 %v1078, %v1075
        %v1103 = vpack.c.b16 %v1079, %v1076
        %v1104 = vpack.c.b16 %v1080, %v1077
        %1129 = vmatprep.subr.bf16.mxu0 %v1082
        %1130 = vmatpush1.bf16.msra.mxu0 %v1081
        %1131 = vmatprep.subr.bf16.mxu0 %v1085
        %1132 = vmatpush1.bf16.msra.mxu0 %v1084
        %1133 = vmatprep.subr.bf16.mxu0 %v1088
        %1134 = vmatpush1.bf16.msra.mxu0 %v1087
        %1135 = vmatprep.subr.bf16.mxu0 %v1091
        %1136 = vmatpush1.bf16.msra.mxu0 %v1090
        %1137 = vmatprep.subr.bf16.mxu0 %v1094
        %1138 = vmatpush1.bf16.msra.mxu0 %v1093
        %1139 = vmatprep.subr.bf16.mxu0 %v1097
        %1140 = vmatpush1.bf16.msra.mxu0 %v1096
        %1141 = vmatprep.subr.bf16.mxu0 %v1100
        %1142 = vmatpush1.bf16.msra.mxu0 %v1099
        %1143 = vmatprep.subr.bf16.mxu0 %v1103
        %1144 = vmatpush1.bf16.msra.mxu0 %v1102
        %1145 = vmatprep.subr.bf16.mxu0 0
        %1146 = vmatpush1.bf16.msra.mxu0 0
        %1147 = vmatprep.subr.bf16.mxu0 0
        %1148 = vmatpush1.bf16.msra.mxu0 0
        %1149 = vmatprep.subr.bf16.mxu0 0
        %1150 = vmatpush1.bf16.msra.mxu0 0
        %1151 = vmatprep.subr.bf16.mxu0 0
        %1152 = vmatpush1.bf16.msra.mxu0 0
        %1153 = vmatprep.subr.bf16.mxu0 0
        %1154 = vmatpush1.bf16.msra.mxu0 0
        %1155 = vmatprep.subr.bf16.mxu0 0
        %1156 = vmatpush1.bf16.msra.mxu0 0
        %1157 = vmatprep.subr.bf16.mxu0 0
        %1158 = vmatpush1.bf16.msra.mxu0 0
        %1159 = vmatprep.subr.bf16.mxu0 0
        %1160 = vmatpush1.bf16.msra.mxu0 0
        %1161 = vmatprep.mubr.bf16.mxu0 0
        %1162 = vmatmul.mubr.bf16.gmra.mrb[0].mxu0 %v999
        %v1163 = vpop.f32.mrb[0].mxu0
        %v1164 = vadd.f32 0.0, %v1163
        %v1165 = vpop.f32.mrb[0].mxu0
        %v1166 = vadd.f32 0.0, %v1165
        %v1167 = vpop.f32.mrb[0].mxu0
        %v1168 = vpop.f32.mrb[0].mxu0
        %1169 = vdwg.mxu0
        %1170 = vmatprep.subr.bf16.mxu0 0
        %1171 = vmatpush1.bf16.msra.mxu0 %v1083
        %1172 = vmatprep.subr.bf16.mxu0 0
        %1173 = vmatpush1.bf16.msra.mxu0 %v1086
        %1174 = vmatprep.subr.bf16.mxu0 0
        %1175 = vmatpush1.bf16.msra.mxu0 %v1089
        %1176 = vmatprep.subr.bf16.mxu0 0
        %1177 = vmatpush1.bf16.msra.mxu0 %v1092
        %1178 = vmatprep.subr.bf16.mxu0 0
        %1179 = vmatpush1.bf16.msra.mxu0 %v1095
        %1180 = vmatprep.subr.bf16.mxu0 0
        %1181 = vmatpush1.bf16.msra.mxu0 %v1098
        %1182 = vmatprep.subr.bf16.mxu0 0
        %1183 = vmatpush1.bf16.msra.mxu0 %v1101
        %1184 = vmatprep.subr.bf16.mxu0 0
        %1185 = vmatpush1.bf16.msra.mxu0 %v1104
        %1186 = vmatprep.subr.bf16.mxu0 0
        %1187 = vmatpush1.bf16.msra.mxu0 0
        %1188 = vmatprep.subr.bf16.mxu0 0
        %1189 = vmatpush1.bf16.msra.mxu0 0
        %1190 = vmatprep.subr.bf16.mxu0 0
        %1191 = vmatpush1.bf16.msra.mxu0 0
        %1192 = vmatprep.subr.bf16.mxu0 0
        %1193 = vmatpush1.bf16.msra.mxu0 0
        %1194 = vmatprep.subr.bf16.mxu0 0
        %1195 = vmatpush1.bf16.msra.mxu0 0
        %1196 = vmatprep.subr.bf16.mxu0 0
        %1197 = vmatpush1.bf16.msra.mxu0 0
        %1198 = vmatprep.subr.bf16.mxu0 0
        %1199 = vmatpush1.bf16.msra.mxu0 0
        %1200 = vmatprep.subr.bf16.mxu0 0
        %1201 = vmatpush1.bf16.msra.mxu0 0
        %1202 = vmatprep.mubr.bf16.mxu0 0
        %1203 = vmatmul.mubr.bf16.gmra.mrb[0].mxu0 %v999
        %v1204 = vpop.f32.mrb[0].mxu0
        %v1205 = vadd.f32 0.0, %v1204
        %v1206 = vpop.f32.mrb[0].mxu0
        %v1207 = vpop.f32.mrb[0].mxu0
        %v1208 = vpop.f32.mrb[0].mxu0
        %1209 = vdwg.mxu0
        %v1211 = vunpack.c.l.b16 %v719
        %v1212 = vunpack.c.h.b16 %v719
        %v1213 = vpack.c.b16 %v1211, %v1211
        %v1214 = vpack.c.b16 %v1212, %v1212
        %v1281 = vunpack.c.l.b16 %v873
        %v1282 = vunpack.c.h.b16 %v873
        %v1283 = vunpack.c.l.b16 %v874
        %v1284 = vunpack.c.l.b16 %v875
        %v1285 = vunpack.c.h.b16 %v875
        %v1286 = vunpack.c.l.b16 %v876
        %v1287 = vunpack.c.l.b16 %v877
        %v1288 = vunpack.c.h.b16 %v877
        %v1289 = vunpack.c.l.b16 %v878
        %v1290 = vunpack.c.l.b16 %v879
        %v1291 = vunpack.c.h.b16 %v879
        %v1292 = vunpack.c.l.b16 %v880
        %v1293 = vunpack.c.l.b16 %v881
        %v1294 = vunpack.c.h.b16 %v881
        %v1295 = vunpack.c.l.b16 %v882
        %v1296 = vunpack.c.l.b16 %v883
        %v1297 = vunpack.c.h.b16 %v883
        %v1298 = vunpack.c.l.b16 %v884
        %v1299 = vunpack.c.l.b16 %v885
        %v1300 = vunpack.c.h.b16 %v885
        %v1301 = vunpack.c.l.b16 %v886
        %v1302 = vunpack.c.l.b16 %v887
        %v1303 = vunpack.c.h.b16 %v887
        %v1304 = vunpack.c.l.b16 %v888
        %v1305 = vunpack.c.l.b16 %v889
        %v1306 = vunpack.c.h.b16 %v889
        %v1307 = vunpack.c.l.b16 %v890
        %v1308 = vunpack.c.l.b16 %v891
        %v1309 = vunpack.c.h.b16 %v891
        %v1310 = vunpack.c.l.b16 %v892
        %v1311 = vunpack.c.l.b16 %v893
        %v1312 = vunpack.c.h.b16 %v893
        %v1313 = vunpack.c.l.b16 %v894
        %v1314 = vunpack.c.l.b16 %v895
        %v1315 = vunpack.c.h.b16 %v895
        %v1316 = vunpack.c.l.b16 %v896
        %v1317 = vunpack.c.l.b16 %v897
        %v1318 = vunpack.c.h.b16 %v897
        %v1319 = vunpack.c.l.b16 %v898
        %v1320 = vunpack.c.l.b16 %v899
        %v1321 = vunpack.c.h.b16 %v899
        %v1322 = vunpack.c.l.b16 %v900
        %v1323 = vunpack.c.l.b16 %v901
        %v1324 = vunpack.c.h.b16 %v901
        %v1325 = vunpack.c.l.b16 %v902
        %v1326 = vunpack.c.l.b16 %v903
        %v1327 = vunpack.c.h.b16 %v903
        %v1328 = vunpack.c.l.b16 %v904
        %v1329 = vunpack.c.l.b16 %v905
        %v1330 = vunpack.c.h.b16 %v905
        %v1331 = vunpack.c.l.b16 %v906
        %v1332 = vunpack.c.l.b16 %v907
        %v1333 = vunpack.c.h.b16 %v907
        %v1334 = vunpack.c.l.b16 %v908
        %v1335 = vunpack.c.l.b16 %v909
        %v1336 = vunpack.c.h.b16 %v909
        %v1337 = vunpack.c.l.b16 %v910
        %v1338 = vunpack.c.l.b16 %v911
        %v1339 = vunpack.c.h.b16 %v911
        %v1340 = vunpack.c.l.b16 %v912
        %v1341 = vunpack.c.l.b16 %v913
        %v1342 = vunpack.c.h.b16 %v913
        %v1343 = vunpack.c.l.b16 %v914
        %v1344 = vunpack.c.l.b16 %v915
        %v1345 = vunpack.c.h.b16 %v915
        %v1346 = vunpack.c.l.b16 %v916
        %v1347 = vunpack.c.l.b16 %v917
        %v1348 = vunpack.c.h.b16 %v917
        %v1349 = vunpack.c.l.b16 %v918
        %v1350 = vunpack.c.l.b16 %v919
        %v1351 = vunpack.c.h.b16 %v919
        %v1352 = vunpack.c.l.b16 %v920
        %v1353 = vunpack.c.l.b16 %v921
        %v1354 = vunpack.c.h.b16 %v921
        %v1355 = vunpack.c.l.b16 %v922
        %v1356 = vunpack.c.l.b16 %v923
        %v1357 = vunpack.c.h.b16 %v923
        %v1358 = vunpack.c.l.b16 %v924
        %v1359 = vunpack.c.l.b16 %v925
        %v1360 = vunpack.c.h.b16 %v925
        %v1361 = vunpack.c.l.b16 %v926
        %v1362 = vunpack.c.l.b16 %v927
        %v1363 = vunpack.c.h.b16 %v927
        %v1364 = vunpack.c.l.b16 %v928
        %v1365 = vunpack.c.l.b16 %v929
        %v1366 = vunpack.c.h.b16 %v929
        %v1367 = vunpack.c.l.b16 %v930
        %v1368 = vunpack.c.l.b16 %v931
        %v1369 = vunpack.c.h.b16 %v931
        %v1370 = vunpack.c.l.b16 %v932
        %v1371 = vunpack.c.l.b16 %v933
        %v1372 = vunpack.c.h.b16 %v933
        %v1373 = vunpack.c.l.b16 %v934
        %v1374 = vunpack.c.l.b16 %v935
        %v1375 = vunpack.c.h.b16 %v935
        %v1376 = vunpack.c.l.b16 %v936
        %v1377 = vpack.c.b16 %v1284, %v1281
        %v1378 = vpack.c.b16 %v1285, %v1282
        %v1379 = vpack.c.b16 %v1286, %v1283
        %v1380 = vpack.c.b16 %v1290, %v1287
        %v1381 = vpack.c.b16 %v1291, %v1288
        %v1382 = vpack.c.b16 %v1292, %v1289
        %v1383 = vpack.c.b16 %v1296, %v1293
        %v1384 = vpack.c.b16 %v1297, %v1294
        %v1385 = vpack.c.b16 %v1298, %v1295
        %v1386 = vpack.c.b16 %v1302, %v1299
        %v1387 = vpack.c.b16 %v1303, %v1300
        %v1388 = vpack.c.b16 %v1304, %v1301
        %v1389 = vpack.c.b16 %v1308, %v1305
        %v1390 = vpack.c.b16 %v1309, %v1306
        %v1391 = vpack.c.b16 %v1310, %v1307
        %v1392 = vpack.c.b16 %v1314, %v1311
        %v1393 = vpack.c.b16 %v1315, %v1312
        %v1394 = vpack.c.b16 %v1316, %v1313
        %v1395 = vpack.c.b16 %v1320, %v1317
        %v1396 = vpack.c.b16 %v1321, %v1318
        %v1397 = vpack.c.b16 %v1322, %v1319
        %v1398 = vpack.c.b16 %v1326, %v1323
        %v1399 = vpack.c.b16 %v1327, %v1324
        %v1400 = vpack.c.b16 %v1328, %v1325
        %v1401 = vpack.c.b16 %v1332, %v1329
        %v1402 = vpack.c.b16 %v1333, %v1330
        %v1403 = vpack.c.b16 %v1334, %v1331
        %v1404 = vpack.c.b16 %v1338, %v1335
        %v1405 = vpack.c.b16 %v1339, %v1336
        %v1406 = vpack.c.b16 %v1340, %v1337
        %v1407 = vpack.c.b16 %v1344, %v1341
        %v1408 = vpack.c.b16 %v1345, %v1342
        %v1409 = vpack.c.b16 %v1346, %v1343
        %v1410 = vpack.c.b16 %v1350, %v1347
        %v1411 = vpack.c.b16 %v1351, %v1348
        %v1412 = vpack.c.b16 %v1352, %v1349
        %v1413 = vpack.c.b16 %v1356, %v1353
        %v1414 = vpack.c.b16 %v1357, %v1354
        %v1415 = vpack.c.b16 %v1358, %v1355
        %v1416 = vpack.c.b16 %v1362, %v1359
        %v1417 = vpack.c.b16 %v1363, %v1360
        %v1418 = vpack.c.b16 %v1364, %v1361
        %v1419 = vpack.c.b16 %v1368, %v1365
        %v1420 = vpack.c.b16 %v1369, %v1366
        %v1421 = vpack.c.b16 %v1370, %v1367
        %v1422 = vpack.c.b16 %v1374, %v1371
        %v1423 = vpack.c.b16 %v1375, %v1372
        %v1424 = vpack.c.b16 %v1376, %v1373
        %1473 = vmatprep.subr.bf16.mxu0 %v1378
        %1474 = vmatpush1.bf16.msra.mxu0 %v1377
        %1475 = vmatprep.subr.bf16.mxu0 %v1381
        %1476 = vmatpush1.bf16.msra.mxu0 %v1380
        %1477 = vmatprep.subr.bf16.mxu0 %v1384
        %1478 = vmatpush1.bf16.msra.mxu0 %v1383
        %1479 = vmatprep.subr.bf16.mxu0 %v1387
        %1480 = vmatpush1.bf16.msra.mxu0 %v1386
        %1481 = vmatprep.subr.bf16.mxu0 %v1390
        %1482 = vmatpush1.bf16.msra.mxu0 %v1389
        %1483 = vmatprep.subr.bf16.mxu0 %v1393
        %1484 = vmatpush1.bf16.msra.mxu0 %v1392
        %1485 = vmatprep.subr.bf16.mxu0 %v1396
        %1486 = vmatpush1.bf16.msra.mxu0 %v1395
        %1487 = vmatprep.subr.bf16.mxu0 %v1399
        %1488 = vmatpush1.bf16.msra.mxu0 %v1398
        %1489 = vmatprep.subr.bf16.mxu0 %v1402
        %1490 = vmatpush1.bf16.msra.mxu0 %v1401
        %1491 = vmatprep.subr.bf16.mxu0 %v1405
        %1492 = vmatpush1.bf16.msra.mxu0 %v1404
        %1493 = vmatprep.subr.bf16.mxu0 %v1408
        %1494 = vmatpush1.bf16.msra.mxu0 %v1407
        %1495 = vmatprep.subr.bf16.mxu0 %v1411
        %1496 = vmatpush1.bf16.msra.mxu0 %v1410
        %1497 = vmatprep.subr.bf16.mxu0 %v1414
        %1498 = vmatpush1.bf16.msra.mxu0 %v1413
        %1499 = vmatprep.subr.bf16.mxu0 %v1417
        %1500 = vmatpush1.bf16.msra.mxu0 %v1416
        %1501 = vmatprep.subr.bf16.mxu0 %v1420
        %1502 = vmatpush1.bf16.msra.mxu0 %v1419
        %1503 = vmatprep.subr.bf16.mxu0 %v1423
        %1504 = vmatpush1.bf16.msra.mxu0 %v1422
        %1505 = vmatprep.mubr.bf16.mxu0 %v1214
        %1506 = vmatmul.mubr.bf16.gmra.mrb[0].mxu0 %v1213
        %v1507 = vpop.f32.mrb[0].mxu0
        %v1508 = vadd.f32 %v1164, %v1507
        %v1509 = vpop.f32.mrb[0].mxu0
        %v1510 = vadd.f32 %v1166, %v1509
        %v1511 = vpop.f32.mrb[0].mxu0
        %v1512 = vpop.f32.mrb[0].mxu0
        %1513 = vdwg.mxu0
        %1514 = vmatprep.subr.bf16.mxu0 0
        %1515 = vmatpush1.bf16.msra.mxu0 %v1379
        %1516 = vmatprep.subr.bf16.mxu0 0
        %1517 = vmatpush1.bf16.msra.mxu0 %v1382
        %1518 = vmatprep.subr.bf16.mxu0 0
        %1519 = vmatpush1.bf16.msra.mxu0 %v1385
        %1520 = vmatprep.subr.bf16.mxu0 0
        %1521 = vmatpush1.bf16.msra.mxu0 %v1388
        %1522 = vmatprep.subr.bf16.mxu0 0
        %1523 = vmatpush1.bf16.msra.mxu0 %v1391
        %1524 = vmatprep.subr.bf16.mxu0 0
        %1525 = vmatpush1.bf16.msra.mxu0 %v1394
        %1526 = vmatprep.subr.bf16.mxu0 0
        %1527 = vmatpush1.bf16.msra.mxu0 %v1397
        %1528 = vmatprep.subr.bf16.mxu0 0
        %1529 = vmatpush1.bf16.msra.mxu0 %v1400
        %1530 = vmatprep.subr.bf16.mxu0 0
        %1531 = vmatpush1.bf16.msra.mxu0 %v1403
        %1532 = vmatprep.subr.bf16.mxu0 0
        %1533 = vmatpush1.bf16.msra.mxu0 %v1406
        %1534 = vmatprep.subr.bf16.mxu0 0
        %1535 = vmatpush1.bf16.msra.mxu0 %v1409
        %1536 = vmatprep.subr.bf16.mxu0 0
        %1537 = vmatpush1.bf16.msra.mxu0 %v1412
        %1538 = vmatprep.subr.bf16.mxu0 0
        %1539 = vmatpush1.bf16.msra.mxu0 %v1415
        %1540 = vmatprep.subr.bf16.mxu0 0
        %1541 = vmatpush1.bf16.msra.mxu0 %v1418
        %1542 = vmatprep.subr.bf16.mxu0 0
        %1543 = vmatpush1.bf16.msra.mxu0 %v1421
        %1544 = vmatprep.subr.bf16.mxu0 0
        %1545 = vmatpush1.bf16.msra.mxu0 %v1424
        %1546 = vmatprep.mubr.bf16.mxu0 %v1214
        %1547 = vmatmul.mubr.bf16.gmra.mrb[0].mxu0 %v1213
        %v1548 = vpop.f32.mrb[0].mxu0
        %v1549 = vadd.f32 %v1205, %v1548
        %v1550 = vpop.f32.mrb[0].mxu0
        %v1551 = vpop.f32.mrb[0].mxu0
        %v1552 = vpop.f32.mrb[0].mxu0
        %1553 = vdwg.mxu0
        %v1554 = vld [vmem:[#allocation23] sm:$0x7]
        %v1556 = vlaneseq
        %v1557 = vshrl.u32 %v1556, 7
        %v1558 = vsub.s32 0, %v1557
        %v1559 = vrot.slane %v1554, %v1558
        %v1560 = vlaneseq
        %v1561 = vshrl.u32 %v1560, 7
        %v1562 = vsub.s32 1, %v1561
        %v1563 = vrot.slane %v1554, %v1562
        %v1564 = vlaneseq
        %v1565 = vshrl.u32 %v1564, 7
        %v1566 = vsub.s32 2, %v1565
        %v1567 = vrot.slane %v1554, %v1566
        %v1571 = vadd.f32 %v1508, %v1559
        %v1572 = vadd.f32 %v1510, %v1563
        %v1573 = vadd.f32 %v1549, %v1567
        %v1574 = vld [vmem:[#allocation21] sm:$0xff]
        %v1575 = vld [vmem:[#allocation21 + $0x8] sm:$0xf]
        %v1576 = vld [vmem:[#allocation21 + $0xc] sm:$0xff]
        %v1577 = vld [vmem:[#allocation21 + $0x14] sm:$0xf]
        %v1578 = vld [vmem:[#allocation21 + $0x18] sm:$0xff]
        %v1579 = vld [vmem:[#allocation21 + $0x20] sm:$0xf]
        %v1580 = vld [vmem:[#allocation21 + $0x24] sm:$0xff]
        %v1581 = vld [vmem:[#allocation21 + $0x2c] sm:$0xf]
        %v1582 = vld [vmem:[#allocation21 + $0x30] sm:$0xff]
        %v1583 = vld [vmem:[#allocation21 + $0x38] sm:$0xf]
        %v1584 = vld [vmem:[#allocation21 + $0x3c] sm:$0xff]
        %v1585 = vld [vmem:[#allocation21 + $0x44] sm:$0xf]
        %v1586 = vld [vmem:[#allocation21 + $0x48] sm:$0xff]
        %v1587 = vld [vmem:[#allocation21 + $0x50] sm:$0xf]
        %v1588 = vld [vmem:[#allocation21 + $0x54] sm:$0xff]
        %v1589 = vld [vmem:[#allocation21 + $0x5c] sm:$0xf]
        %v1590 = vld [vmem:[#allocation21 + $0x60] sm:$0xff]
        %v1591 = vld [vmem:[#allocation21 + $0x68] sm:$0xf]
        %v1592 = vld [vmem:[#allocation21 + $0x6c] sm:$0xff]
        %v1593 = vld [vmem:[#allocation21 + $0x74] sm:$0xf]
        %v1594 = vld [vmem:[#allocation21 + $0x78] sm:$0xff]
        %v1595 = vld [vmem:[#allocation21 + $0x80] sm:$0xf]
        %v1596 = vld [vmem:[#allocation21 + $0x84] sm:$0xff]
        %v1597 = vld [vmem:[#allocation21 + $0x8c] sm:$0xf]
        %v1598 = vld [vmem:[#allocation21 + $0x90] sm:$0xff]
        %v1599 = vld [vmem:[#allocation21 + $0x98] sm:$0xf]
        %v1600 = vld [vmem:[#allocation21 + $0x9c] sm:$0xff]
        %v1601 = vld [vmem:[#allocation21 + $0xa4] sm:$0xf]
        %v1602 = vld [vmem:[#allocation21 + $0xa8] sm:$0xff]
        %v1603 = vld [vmem:[#allocation21 + $0xb0] sm:$0xf]
        %v1604 = vld [vmem:[#allocation21 + $0xb4] sm:$0xff]
        %v1605 = vld [vmem:[#allocation21 + $0xbc] sm:$0xf]
        %v1606 = vld [vmem:[#allocation24] sm:$0x7]
        %v1608 = vlaneseq
        %v1609 = vshrl.u32 %v1608, 7
        %v1610 = vsub.s32 0, %v1609
        %v1611 = vrot.slane %v1606, %v1610
        %v1612 = vlaneseq
        %v1613 = vshrl.u32 %v1612, 7
        %v1614 = vsub.s32 1, %v1613
        %v1615 = vrot.slane %v1606, %v1614
        %v1616 = vlaneseq
        %v1617 = vshrl.u32 %v1616, 7
        %v1618 = vsub.s32 2, %v1617
        %v1619 = vrot.slane %v1606, %v1618
        %v1655 = vunpack.c.l.b16 %v1574
        %v1656 = vunpack.c.h.b16 %v1574
        %v1657 = vunpack.c.l.b16 %v1575
        %v1658 = vunpack.c.l.b16 %v1576
        %v1659 = vunpack.c.h.b16 %v1576
        %v1660 = vunpack.c.l.b16 %v1577
        %v1661 = vunpack.c.l.b16 %v1578
        %v1662 = vunpack.c.h.b16 %v1578
        %v1663 = vunpack.c.l.b16 %v1579
        %v1664 = vunpack.c.l.b16 %v1580
        %v1665 = vunpack.c.h.b16 %v1580
        %v1666 = vunpack.c.l.b16 %v1581
        %v1667 = vunpack.c.l.b16 %v1582
        %v1668 = vunpack.c.h.b16 %v1582
        %v1669 = vunpack.c.l.b16 %v1583
        %v1670 = vunpack.c.l.b16 %v1584
        %v1671 = vunpack.c.h.b16 %v1584
        %v1672 = vunpack.c.l.b16 %v1585
        %v1673 = vunpack.c.l.b16 %v1586
        %v1674 = vunpack.c.h.b16 %v1586
        %v1675 = vunpack.c.l.b16 %v1587
        %v1676 = vunpack.c.l.b16 %v1588
        %v1677 = vunpack.c.h.b16 %v1588
        %v1678 = vunpack.c.l.b16 %v1589
        %v1679 = vunpack.c.l.b16 %v1590
        %v1680 = vunpack.c.h.b16 %v1590
        %v1681 = vunpack.c.l.b16 %v1591
        %v1682 = vunpack.c.l.b16 %v1592
        %v1683 = vunpack.c.h.b16 %v1592
        %v1684 = vunpack.c.l.b16 %v1593
        %v1685 = vunpack.c.l.b16 %v1594
        %v1686 = vunpack.c.h.b16 %v1594
        %v1687 = vunpack.c.l.b16 %v1595
        %v1688 = vunpack.c.l.b16 %v1596
        %v1689 = vunpack.c.h.b16 %v1596
        %v1690 = vunpack.c.l.b16 %v1597
        %v1691 = vunpack.c.l.b16 %v1598
        %v1692 = vunpack.c.h.b16 %v1598
        %v1693 = vunpack.c.l.b16 %v1599
        %v1694 = vunpack.c.l.b16 %v1600
        %v1695 = vunpack.c.h.b16 %v1600
        %v1696 = vunpack.c.l.b16 %v1601
        %v1697 = vunpack.c.l.b16 %v1602
        %v1698 = vunpack.c.h.b16 %v1602
        %v1699 = vunpack.c.l.b16 %v1603
        %v1700 = vunpack.c.l.b16 %v1604
        %v1701 = vunpack.c.h.b16 %v1604
        %v1702 = vunpack.c.l.b16 %v1605
        %v1703 = vpack.c.b16 %v1658, %v1655
        %v1704 = vpack.c.b16 %v1659, %v1656
        %v1705 = vpack.c.b16 %v1660, %v1657
        %v1706 = vpack.c.b16 %v1664, %v1661
        %v1707 = vpack.c.b16 %v1665, %v1662
        %v1708 = vpack.c.b16 %v1666, %v1663
        %v1709 = vpack.c.b16 %v1670, %v1667
        %v1710 = vpack.c.b16 %v1671, %v1668
        %v1711 = vpack.c.b16 %v1672, %v1669
        %v1712 = vpack.c.b16 %v1676, %v1673
        %v1713 = vpack.c.b16 %v1677, %v1674
        %v1714 = vpack.c.b16 %v1678, %v1675
        %v1715 = vpack.c.b16 %v1682, %v1679
        %v1716 = vpack.c.b16 %v1683, %v1680
        %v1717 = vpack.c.b16 %v1684, %v1681
        %v1718 = vpack.c.b16 %v1688, %v1685
        %v1719 = vpack.c.b16 %v1689, %v1686
        %v1720 = vpack.c.b16 %v1690, %v1687
        %v1721 = vpack.c.b16 %v1694, %v1691
        %v1722 = vpack.c.b16 %v1695, %v1692
        %v1723 = vpack.c.b16 %v1696, %v1693
        %v1724 = vpack.c.b16 %v1700, %v1697
        %v1725 = vpack.c.b16 %v1701, %v1698
        %v1726 = vpack.c.b16 %v1702, %v1699
        %1751 = vmatprep.subr.bf16.mxu0 %v1704
        %1752 = vmatpush1.bf16.msra.mxu0 %v1703
        %1753 = vmatprep.subr.bf16.mxu0 %v1707
        %1754 = vmatpush1.bf16.msra.mxu0 %v1706
        %1755 = vmatprep.subr.bf16.mxu0 %v1710
        %1756 = vmatpush1.bf16.msra.mxu0 %v1709
        %1757 = vmatprep.subr.bf16.mxu0 %v1713
        %1758 = vmatpush1.bf16.msra.mxu0 %v1712
        %1759 = vmatprep.subr.bf16.mxu0 %v1716
        %1760 = vmatpush1.bf16.msra.mxu0 %v1715
        %1761 = vmatprep.subr.bf16.mxu0 %v1719
        %1762 = vmatpush1.bf16.msra.mxu0 %v1718
        %1763 = vmatprep.subr.bf16.mxu0 %v1722
        %1764 = vmatpush1.bf16.msra.mxu0 %v1721
        %1765 = vmatprep.subr.bf16.mxu0 %v1725
        %1766 = vmatpush1.bf16.msra.mxu0 %v1724
        %1767 = vmatprep.subr.bf16.mxu0 0
        %1768 = vmatpush1.bf16.msra.mxu0 0
        %1769 = vmatprep.subr.bf16.mxu0 0
        %1770 = vmatpush1.bf16.msra.mxu0 0
        %1771 = vmatprep.subr.bf16.mxu0 0
        %1772 = vmatpush1.bf16.msra.mxu0 0
        %1773 = vmatprep.subr.bf16.mxu0 0
        %1774 = vmatpush1.bf16.msra.mxu0 0
        %1775 = vmatprep.subr.bf16.mxu0 0
        %1776 = vmatpush1.bf16.msra.mxu0 0
        %1777 = vmatprep.subr.bf16.mxu0 0
        %1778 = vmatpush1.bf16.msra.mxu0 0
        %1779 = vmatprep.subr.bf16.mxu0 0
        %1780 = vmatpush1.bf16.msra.mxu0 0
        %1781 = vmatprep.subr.bf16.mxu0 0
        %1782 = vmatpush1.bf16.msra.mxu0 0
        %1783 = vmatprep.mubr.bf16.mxu0 0
        %1784 = vmatmul.mubr.bf16.gmra.mrb[0].mxu0 %v864
        %v1785 = vpop.f32.mrb[0].mxu0
        %v1786 = vadd.f32 %v1611, %v1785
        %v1787 = vpop.f32.mrb[0].mxu0
        %v1788 = vadd.f32 %v1615, %v1787
        %v1789 = vpop.f32.mrb[0].mxu0
        %v1790 = vpop.f32.mrb[0].mxu0
        %1791 = vdwg.mxu0
        %1792 = vmatprep.subr.bf16.mxu0 0
        %1793 = vmatpush1.bf16.msra.mxu0 %v1705
        %1794 = vmatprep.subr.bf16.mxu0 0
        %1795 = vmatpush1.bf16.msra.mxu0 %v1708
        %1796 = vmatprep.subr.bf16.mxu0 0
        %1797 = vmatpush1.bf16.msra.mxu0 %v1711
        %1798 = vmatprep.subr.bf16.mxu0 0
        %1799 = vmatpush1.bf16.msra.mxu0 %v1714
        %1800 = vmatprep.subr.bf16.mxu0 0
        %1801 = vmatpush1.bf16.msra.mxu0 %v1717
        %1802 = vmatprep.subr.bf16.mxu0 0
        %1803 = vmatpush1.bf16.msra.mxu0 %v1720
        %1804 = vmatprep.subr.bf16.mxu0 0
        %1805 = vmatpush1.bf16.msra.mxu0 %v1723
        %1806 = vmatprep.subr.bf16.mxu0 0
        %1807 = vmatpush1.bf16.msra.mxu0 %v1726
        %1808 = vmatprep.subr.bf16.mxu0 0
        %1809 = vmatpush1.bf16.msra.mxu0 0
        %1810 = vmatprep.subr.bf16.mxu0 0
        %1811 = vmatpush1.bf16.msra.mxu0 0
        %1812 = vmatprep.subr.bf16.mxu0 0
        %1813 = vmatpush1.bf16.msra.mxu0 0
        %1814 = vmatprep.subr.bf16.mxu0 0
        %1815 = vmatpush1.bf16.msra.mxu0 0
        %1816 = vmatprep.subr.bf16.mxu0 0
        %1817 = vmatpush1.bf16.msra.mxu0 0
        %1818 = vmatprep.subr.bf16.mxu0 0
        %1819 = vmatpush1.bf16.msra.mxu0 0
        %1820 = vmatprep.subr.bf16.mxu0 0
        %1821 = vmatpush1.bf16.msra.mxu0 0
        %1822 = vmatprep.subr.bf16.mxu0 0
        %1823 = vmatpush1.bf16.msra.mxu0 0
        %1824 = vmatprep.mubr.bf16.mxu0 0
        %1825 = vmatmul.mubr.bf16.gmra.mrb[0].mxu0 %v864
        %v1826 = vpop.f32.mrb[0].mxu0
        %v1827 = vadd.f32 %v1619, %v1826
        %v1828 = vpop.f32.mrb[0].mxu0
        %v1829 = vpop.f32.mrb[0].mxu0
        %v1830 = vpop.f32.mrb[0].mxu0
        %1831 = vdwg.mxu0
        %v1832 = vadd.f32 %v1571, %v1786
        %v1833 = vxor.u32 %v1832, 2147483648
        %v1834 = vmul.f32 %v1833, 1.442695
        %v1835 = vpow.pop %v1834
        %v1836 = vadd.f32 %v1835, 1.0
        %v1837 = vrcp.pop %v1836
        %v1838 = vmul.f32 1.0, %v1837
        %v1839 = vadd.f32 %v1572, %v1788
        %v1840 = vxor.u32 %v1839, 2147483648
        %v1841 = vmul.f32 %v1840, 1.442695
        %v1842 = vpow.pop %v1841
        %v1843 = vadd.f32 %v1842, 1.0
        %v1844 = vrcp.pop %v1843
        %v1845 = vmul.f32 1.0, %v1844
        %v1846 = vmul.f32 %v1838, %v1827
        %v1847 = vadd.f32 %v1573, %v1846
        %v1848 = vtanh.pop %v1847
        %v1849 = vsub.f32 1.0, %v1845
        %v1850 = vmul.f32 %v1849, %v1848
        %v1851 = vmul.f32 %v1845, %v711
        %v1852 = vadd.f32 %v1850, %v1851
        %1853 = vst [vmem:[#allocation2] sm:$0xff] %v1852
        %v1854 = vpack.c.bf16 %v1852, %v1852
        loop: start=0, step=1, limit=3
        $region137: #{decoder_forward.1} parent=75 // loop_pre_header
          _
        $region138: #{decoder_forward.1} parent=75 // loop_header
          %s1856 = sphi 0, %s1860
          %p1857 = scmp.ge.s32.totalorder %s1856, 3
          %v1861 = vphi -inf, %v2006
          %v1862 = vphi 0, %v2007
        $region139: #{decoder_forward.1} parent=75 // loop_header_branch
          %1859 = sbr.rel (%p1857) target = $region143
        $region140: #{decoder_forward.1} parent=75 // loop_body
          %s1863 = smul.u32 %s1856, 128
          %s1864 = sshra.s32 %s1863, 7
          %s1865 = sand.u32 %s1863, 127
          %s1866 = smul.addr %s1864, 4
          %s1867 = scalar_lea.vmem [#allocation26], %s1866
          %v1868 = vld [vmem:[%s1867] sm:$0xf]
          %v1869 = vld [vmem:[%s1867 + $0xc] sm:$0xf]
          %v1870 = vld [vmem:[%s1867 + $0x18] sm:$0xf]
          %v1871 = vld [vmem:[%s1867 + $0x24] sm:$0xf]
          %v1872 = vld [vmem:[%s1867 + $0x30] sm:$0xf]
          %v1873 = vld [vmem:[%s1867 + $0x3c] sm:$0xf]
          %v1874 = vld [vmem:[%s1867 + $0x48] sm:$0xf]
          %v1875 = vld [vmem:[%s1867 + $0x54] sm:$0xf]
          %v1876 = vld [vmem:[%s1867 + $0x60] sm:$0xf]
          %v1877 = vld [vmem:[%s1867 + $0x6c] sm:$0xf]
          %v1878 = vld [vmem:[%s1867 + $0x78] sm:$0xf]
          %v1879 = vld [vmem:[%s1867 + $0x84] sm:$0xf]
          %v1880 = vld [vmem:[%s1867 + $0x90] sm:$0xf]
          %v1881 = vld [vmem:[%s1867 + $0x9c] sm:$0xf]
          %v1882 = vld [vmem:[%s1867 + $0xa8] sm:$0xf]
          %v1883 = vld [vmem:[%s1867 + $0xb4] sm:$0xf]
          %s1884 = scalar_lea.vmem [#allocation27], %s1864
          %v1885 = vld [vmem:[%s1884] sm:$0x1]
          %v1887 = vlaneseq
          %v1888 = vshrl.u32 %v1887, 7
          %v1889 = vsub.s32 0, %v1888
          %v1890 = vrot.slane %v1885, %v1889
          %v1908 = vunpack.c.l.b16 %v1868
          %v1909 = vunpack.c.l.b16 %v1869
          %v1910 = vunpack.c.l.b16 %v1870
          %v1911 = vunpack.c.l.b16 %v1871
          %v1912 = vunpack.c.l.b16 %v1872
          %v1913 = vunpack.c.l.b16 %v1873
          %v1914 = vunpack.c.l.b16 %v1874
          %v1915 = vunpack.c.l.b16 %v1875
          %v1916 = vunpack.c.l.b16 %v1876
          %v1917 = vunpack.c.l.b16 %v1877
          %v1918 = vunpack.c.l.b16 %v1878
          %v1919 = vunpack.c.l.b16 %v1879
          %v1920 = vunpack.c.l.b16 %v1880
          %v1921 = vunpack.c.l.b16 %v1881
          %v1922 = vunpack.c.l.b16 %v1882
          %v1923 = vunpack.c.l.b16 %v1883
          %v1924 = vpack.c.b16 %v1909, %v1908
          %v1925 = vpack.c.b16 %v1911, %v1910
          %v1926 = vpack.c.b16 %v1913, %v1912
          %v1927 = vpack.c.b16 %v1915, %v1914
          %v1928 = vpack.c.b16 %v1917, %v1916
          %v1929 = vpack.c.b16 %v1919, %v1918
          %v1930 = vpack.c.b16 %v1921, %v1920
          %v1931 = vpack.c.b16 %v1923, %v1922
          %1940 = vmatprep.subr.bf16.mxu0 0
          %1941 = vmatpush1.bf16.msra.mxu0 %v1924
          %1942 = vmatprep.subr.bf16.mxu0 0
          %1943 = vmatpush1.bf16.msra.mxu0 %v1925
          %1944 = vmatprep.subr.bf16.mxu0 0
          %1945 = vmatpush1.bf16.msra.mxu0 %v1926
          %1946 = vmatprep.subr.bf16.mxu0 0
          %1947 = vmatpush1.bf16.msra.mxu0 %v1927
          %1948 = vmatprep.subr.bf16.mxu0 0
          %1949 = vmatpush1.bf16.msra.mxu0 %v1928
          %1950 = vmatprep.subr.bf16.mxu0 0
          %1951 = vmatpush1.bf16.msra.mxu0 %v1929
          %1952 = vmatprep.subr.bf16.mxu0 0
          %1953 = vmatpush1.bf16.msra.mxu0 %v1930
          %1954 = vmatprep.subr.bf16.mxu0 0
          %1955 = vmatpush1.bf16.msra.mxu0 %v1931
          %1956 = vmatprep.subr.bf16.mxu0 0
          %1957 = vmatpush1.bf16.msra.mxu0 0
          %1958 = vmatprep.subr.bf16.mxu0 0
          %1959 = vmatpush1.bf16.msra.mxu0 0
          %1960 = vmatprep.subr.bf16.mxu0 0
          %1961 = vmatpush1.bf16.msra.mxu0 0
          %1962 = vmatprep.subr.bf16.mxu0 0
          %1963 = vmatpush1.bf16.msra.mxu0 0
          %1964 = vmatprep.subr.bf16.mxu0 0
          %1965 = vmatpush1.bf16.msra.mxu0 0
          %1966 = vmatprep.subr.bf16.mxu0 0
          %1967 = vmatpush1.bf16.msra.mxu0 0
          %1968 = vmatprep.subr.bf16.mxu0 0
          %1969 = vmatpush1.bf16.msra.mxu0 0
          %1970 = vmatprep.subr.bf16.mxu0 0
          %1971 = vmatpush1.bf16.msra.mxu0 0
          %1972 = vmatprep.mubr.bf16.mxu0 0
          %1973 = vmatmul.mubr.bf16.gmra.mrb[0].mxu0 %v1854
          %v1974 = vpop.f32.mrb[0].mxu0
          %v1975 = vadd.f32 %v1890, %v1974
          %v1976 = vpop.f32.mrb[0].mxu0
          %v1977 = vpop.f32.mrb[0].mxu0
          %v1978 = vpop.f32.mrb[0].mxu0
          %1979 = vdwg.mxu0
          %s1980 = smul.addr %s1864, 8
          %s1981 = scalar_lea.vmem %s694, %s1980 [#allocation29]
          %1982 = vst [vmem:[%s1981] sm:$0xff] %v1975
          %v1983 = vlaneseq
          %v1984 = vand.u32 %v1983, 127
          %v1985 = vstv %s1863
          %v1986 = vadd.s32 %v1984, %v1985
          %1987 = vmax.xlane.f32.xlu0 %v1975
          %v1988 = vpop.xlane.xlu0 %1987
          %vm1989 = vcmp.ge.f32.partialorder %v1975, %v1988
          %v1990 = vsel %vm1989, %v1986, 1073741824
          %v1991 = vand.u32 %v1990, 65535
          %v1992 = vshra.s32 %v1990, 16
          %v1993 = vcvt.s32.f32 %v1991
          %v1994 = vcvt.s32.f32 %v1992
          %1995 = vmin.xlane.f32.xlu0 %v1994
          %v1996 = vpop.xlane.xlu0 %1995
          %vm1997 = vcmp.eq.f32.partialorder %v1994, %v1996
          %v1998 = vsel %vm1997, %v1993, inf
          %1999 = vmin.xlane.f32.xlu0 %v1998
          %v2000 = vpop.xlane.xlu0 %1999
          %v2001 = vcvt.f32.s32 %v2000
          %v2002 = vcvt.f32.s32 %v1996
          %v2003 = vshll.u32 %v2002, 16
          %v2004 = vadd.s32 %v2003, %v2001
          %vm2005 = vcmp.gt.f32.partialorder %v1988, %v1861
          %v2006 = vmax.f32 %v1861, %v1988
          %v2007 = vsel %vm2005, %v2004, %v1862
        $region141: #{decoder_forward.1} parent=75 // loop_footer
          %s1860 = sadd.s32 1, %s1856
        $region142: #{decoder_forward.1} parent=75 // loop_footer_branch
          %1855 = sbr.rel target = $region138
        $region143: #{decoder_forward.1} parent=75 // loop_exit
          _
        %2008 = vst [vmem:[%s701] sm:$0xff] %v1862
        %v2009 = vlaneseq
        %v2010 = vand.u32 %v2009, 127
        %v2011 = vadd.s32 %v2010, 128
        %v2012 = vadd.s32 %v2010, 256
        %vm2013 = vcmp.eq.s32.totalorder %v2010, %v1862
        %vm2014 = vcmp.eq.s32.totalorder %v2011, %v1862
        %vm2015 = vcmp.eq.s32.totalorder %v2012, %v1862
        %v2016 = vsel %vm2013, 1, 0
        %v2017 = vsel %vm2014, 1, 0
        %v2018 = vsel %vm2015, 1, 0
        %v2019 = vcvt.s32.f32 %v2016
        %v2020 = vcvt.s32.f32 %v2017
        %v2021 = vcvt.s32.f32 %v2018
        %v2022 = vpack.c.bf16 %v2019, %v2019
        %v2023 = vpack.c.bf16 %v2020, %v2020
        %v2024 = vpack.c.bf16 %v2021, %v2021
        %v2025 = vld [vmem:[#allocation17] sm:$0xff]
        %v2026 = vld [vmem:[#allocation17 + $0x8] sm:$0xff]
        %v2027 = vld [vmem:[#allocation17 + $0x10] sm:$0xff]
        %v2028 = vld [vmem:[#allocation17 + $0x18] sm:$0xff]
        %v2029 = vld [vmem:[#allocation17 + $0x20] sm:$0xff]
        %v2030 = vld [vmem:[#allocation17 + $0x28] sm:$0xff]
        %v2031 = vld [vmem:[#allocation17 + $0x30] sm:$0xff]
        %v2032 = vld [vmem:[#allocation17 + $0x38] sm:$0xff]
        %v2033 = vld [vmem:[#allocation17 + $0x40] sm:$0xff]
        %v2034 = vld [vmem:[#allocation17 + $0x48] sm:$0xff]
        %v2035 = vld [vmem:[#allocation17 + $0x50] sm:$0xff]
        %v2036 = vld [vmem:[#allocation17 + $0x58] sm:$0xff]
        %v2037 = vld [vmem:[#allocation17 + $0x60] sm:$0xff]
        %v2038 = vld [vmem:[#allocation17 + $0x68] sm:$0xff]
        %v2039 = vld [vmem:[#allocation17 + $0x70] sm:$0xff]
        %v2040 = vld [vmem:[#allocation17 + $0x78] sm:$0xff]
        %v2041 = vld [vmem:[#allocation17 + $0x80] sm:$0xff]
        %v2042 = vld [vmem:[#allocation17 + $0x88] sm:$0xff]
        %v2043 = vld [vmem:[#allocation17 + $0x90] sm:$0xff]
        %v2044 = vld [vmem:[#allocation17 + $0x98] sm:$0xff]
        %v2045 = vld [vmem:[#allocation17 + $0xa0] sm:$0xff]
        %v2046 = vld [vmem:[#allocation17 + $0xa8] sm:$0xff]
        %v2047 = vld [vmem:[#allocation17 + $0xb0] sm:$0xff]
        %v2048 = vld [vmem:[#allocation17 + $0xb8] sm:$0xff]
        %v2049 = vld [vmem:[#allocation17 + $0xc0] sm:$0xff]
        %v2050 = vld [vmem:[#allocation17 + $0xc8] sm:$0xff]
        %v2051 = vld [vmem:[#allocation17 + $0xd0] sm:$0xff]
        %v2052 = vld [vmem:[#allocation17 + $0xd8] sm:$0xff]
        %v2053 = vld [vmem:[#allocation17 + $0xe0] sm:$0xff]
        %v2054 = vld [vmem:[#allocation17 + $0xe8] sm:$0xff]
        %v2055 = vld [vmem:[#allocation17 + $0xf0] sm:$0xff]
        %v2056 = vld [vmem:[#allocation17 + $0xf8] sm:$0xff]
        %v2057 = vld [vmem:[#allocation17 + $0x100] sm:$0xff]
        %v2058 = vld [vmem:[#allocation17 + $0x108] sm:$0xff]
        %v2059 = vld [vmem:[#allocation17 + $0x110] sm:$0xff]
        %v2060 = vld [vmem:[#allocation17 + $0x118] sm:$0xff]
        %v2061 = vld [vmem:[#allocation17 + $0x120] sm:$0xff]
        %v2062 = vld [vmem:[#allocation17 + $0x128] sm:$0xff]
        %v2101 = vunpack.c.l.b16 %v2025
        %v2102 = vunpack.c.h.b16 %v2025
        %v2103 = vunpack.c.l.b16 %v2026
        %v2104 = vunpack.c.h.b16 %v2026
        %v2105 = vunpack.c.l.b16 %v2027
        %v2106 = vunpack.c.h.b16 %v2027
        %v2107 = vunpack.c.l.b16 %v2028
        %v2108 = vunpack.c.h.b16 %v2028
        %v2109 = vunpack.c.l.b16 %v2029
        %v2110 = vunpack.c.h.b16 %v2029
        %v2111 = vunpack.c.l.b16 %v2030
        %v2112 = vunpack.c.h.b16 %v2030
        %v2113 = vunpack.c.l.b16 %v2031
        %v2114 = vunpack.c.h.b16 %v2031
        %v2115 = vunpack.c.l.b16 %v2032
        %v2116 = vunpack.c.h.b16 %v2032
        %v2117 = vunpack.c.l.b16 %v2033
        %v2118 = vunpack.c.h.b16 %v2033
        %v2119 = vunpack.c.l.b16 %v2034
        %v2120 = vunpack.c.h.b16 %v2034
        %v2121 = vunpack.c.l.b16 %v2035
        %v2122 = vunpack.c.h.b16 %v2035
        %v2123 = vunpack.c.l.b16 %v2036
        %v2124 = vunpack.c.h.b16 %v2036
        %v2125 = vunpack.c.l.b16 %v2037
        %v2126 = vunpack.c.h.b16 %v2037
        %v2127 = vunpack.c.l.b16 %v2038
        %v2128 = vunpack.c.h.b16 %v2038
        %v2129 = vunpack.c.l.b16 %v2039
        %v2130 = vunpack.c.h.b16 %v2039
        %v2131 = vunpack.c.l.b16 %v2040
        %v2132 = vunpack.c.h.b16 %v2040
        %v2133 = vunpack.c.l.b16 %v2041
        %v2134 = vunpack.c.h.b16 %v2041
        %v2135 = vunpack.c.l.b16 %v2042
        %v2136 = vunpack.c.h.b16 %v2042
        %v2137 = vunpack.c.l.b16 %v2043
        %v2138 = vunpack.c.h.b16 %v2043
        %v2139 = vunpack.c.l.b16 %v2044
        %v2140 = vunpack.c.h.b16 %v2044
        %v2141 = vunpack.c.l.b16 %v2045
        %v2142 = vunpack.c.h.b16 %v2045
        %v2143 = vunpack.c.l.b16 %v2046
        %v2144 = vunpack.c.h.b16 %v2046
        %v2145 = vunpack.c.l.b16 %v2047
        %v2146 = vunpack.c.h.b16 %v2047
        %v2147 = vunpack.c.l.b16 %v2048
        %v2148 = vunpack.c.h.b16 %v2048
        %v2149 = vunpack.c.l.b16 %v2049
        %v2150 = vunpack.c.h.b16 %v2049
        %v2151 = vunpack.c.l.b16 %v2050
        %v2152 = vunpack.c.h.b16 %v2050
        %v2153 = vunpack.c.l.b16 %v2051
        %v2154 = vunpack.c.h.b16 %v2051
        %v2155 = vunpack.c.l.b16 %v2052
        %v2156 = vunpack.c.h.b16 %v2052
        %v2157 = vunpack.c.l.b16 %v2053
        %v2158 = vunpack.c.h.b16 %v2053
        %v2159 = vunpack.c.l.b16 %v2054
        %v2160 = vunpack.c.h.b16 %v2054
        %v2161 = vunpack.c.l.b16 %v2055
        %v2162 = vunpack.c.h.b16 %v2055
        %v2163 = vunpack.c.l.b16 %v2056
        %v2164 = vunpack.c.h.b16 %v2056
        %v2165 = vunpack.c.l.b16 %v2057
        %v2166 = vunpack.c.h.b16 %v2057
        %v2167 = vunpack.c.l.b16 %v2058
        %v2168 = vunpack.c.h.b16 %v2058
        %v2169 = vunpack.c.l.b16 %v2059
        %v2170 = vunpack.c.h.b16 %v2059
        %v2171 = vunpack.c.l.b16 %v2060
        %v2172 = vunpack.c.h.b16 %v2060
        %v2173 = vunpack.c.l.b16 %v2061
        %v2174 = vunpack.c.h.b16 %v2061
        %v2175 = vunpack.c.l.b16 %v2062
        %v2176 = vunpack.c.h.b16 %v2062
        %v2177 = vpack.c.b16 %v2103, %v2101
        %v2178 = vpack.c.b16 %v2104, %v2102
        %v2179 = vpack.c.b16 %v2107, %v2105
        %v2180 = vpack.c.b16 %v2108, %v2106
        %v2181 = vpack.c.b16 %v2111, %v2109
        %v2182 = vpack.c.b16 %v2112, %v2110
        %v2183 = vpack.c.b16 %v2115, %v2113
        %v2184 = vpack.c.b16 %v2116, %v2114
        %v2185 = vpack.c.b16 %v2119, %v2117
        %v2186 = vpack.c.b16 %v2120, %v2118
        %v2187 = vpack.c.b16 %v2123, %v2121
        %v2188 = vpack.c.b16 %v2124, %v2122
        %v2189 = vpack.c.b16 %v2127, %v2125
        %v2190 = vpack.c.b16 %v2128, %v2126
        %v2191 = vpack.c.b16 %v2131, %v2129
        %v2192 = vpack.c.b16 %v2132, %v2130
        %v2193 = vpack.c.b16 %v2135, %v2133
        %v2194 = vpack.c.b16 %v2136, %v2134
        %v2195 = vpack.c.b16 %v2139, %v2137
        %v2196 = vpack.c.b16 %v2140, %v2138
        %v2197 = vpack.c.b16 %v2143, %v2141
        %v2198 = vpack.c.b16 %v2144, %v2142
        %v2199 = vpack.c.b16 %v2147, %v2145
        %v2200 = vpack.c.b16 %v2148, %v2146
        %v2201 = vpack.c.b16 %v2151, %v2149
        %v2202 = vpack.c.b16 %v2152, %v2150
        %v2203 = vpack.c.b16 %v2155, %v2153
        %v2204 = vpack.c.b16 %v2156, %v2154
        %v2205 = vpack.c.b16 %v2159, %v2157
        %v2206 = vpack.c.b16 %v2160, %v2158
        %v2207 = vpack.c.b16 %v2163, %v2161
        %v2208 = vpack.c.b16 %v2164, %v2162
        %v2209 = vpack.c.b16 %v2167, %v2165
        %v2210 = vpack.c.b16 %v2168, %v2166
        %v2211 = vpack.c.b16 %v2171, %v2169
        %v2212 = vpack.c.b16 %v2172, %v2170
        %v2213 = vpack.c.b16 %v2175, %v2173
        %v2214 = vpack.c.b16 %v2176, %v2174
        %vm2253 = vcmask 392192
        %v2255 = vsel %vm2253, %v2024, 0
        %2257 = vmatprep.subr.bf16.mxu0 %v2178
        %2258 = vmatpush1.bf16.msra.mxu0 %v2177
        %2259 = vmatprep.subr.bf16.mxu0 %v2180
        %2260 = vmatpush1.bf16.msra.mxu0 %v2179
        %2261 = vmatprep.subr.bf16.mxu0 %v2182
        %2262 = vmatpush1.bf16.msra.mxu0 %v2181
        %2263 = vmatprep.subr.bf16.mxu0 %v2184
        %2264 = vmatpush1.bf16.msra.mxu0 %v2183
        %2265 = vmatprep.subr.bf16.mxu0 %v2186
        %2266 = vmatpush1.bf16.msra.mxu0 %v2185
        %2267 = vmatprep.subr.bf16.mxu0 %v2188
        %2268 = vmatpush1.bf16.msra.mxu0 %v2187
        %2269 = vmatprep.subr.bf16.mxu0 %v2190
        %2270 = vmatpush1.bf16.msra.mxu0 %v2189
        %2271 = vmatprep.subr.bf16.mxu0 %v2192
        %2272 = vmatpush1.bf16.msra.mxu0 %v2191
        %2273 = vmatprep.subr.bf16.mxu0 %v2194
        %2274 = vmatpush1.bf16.msra.mxu0 %v2193
        %2275 = vmatprep.subr.bf16.mxu0 %v2196
        %2276 = vmatpush1.bf16.msra.mxu0 %v2195
        %2277 = vmatprep.subr.bf16.mxu0 %v2198
        %2278 = vmatpush1.bf16.msra.mxu0 %v2197
        %2279 = vmatprep.subr.bf16.mxu0 %v2200
        %2280 = vmatpush1.bf16.msra.mxu0 %v2199
        %2281 = vmatprep.subr.bf16.mxu0 %v2202
        %2282 = vmatpush1.bf16.msra.mxu0 %v2201
        %2283 = vmatprep.subr.bf16.mxu0 %v2204
        %2284 = vmatpush1.bf16.msra.mxu0 %v2203
        %2285 = vmatprep.subr.bf16.mxu0 %v2206
        %2286 = vmatpush1.bf16.msra.mxu0 %v2205
        %2287 = vmatprep.subr.bf16.mxu0 %v2208
        %2288 = vmatpush1.bf16.msra.mxu0 %v2207
        %2289 = vmatprep.mubr.bf16.mxu0 %v2023
        %2290 = vmatmul.mubr.bf16.gmra.mrb[0].mxu0 %v2022
        %v2291 = vpop.f32.mrb[0].mxu0
        %v2292 = vadd.f32 0.0, %v2291
        %v2293 = vpop.f32.mrb[0].mxu0
        %v2294 = vadd.f32 0.0, %v2293
        %v2295 = vpop.f32.mrb[0].mxu0
        %v2296 = vpop.f32.mrb[0].mxu0
        %2297 = vdwg.mxu0
        %2298 = vmatprep.subr.bf16.mxu0 %v2210
        %2299 = vmatpush1.bf16.msra.mxu0 %v2209
        %2300 = vmatprep.subr.bf16.mxu0 %v2212
        %2301 = vmatpush1.bf16.msra.mxu0 %v2211
        %2302 = vmatprep.subr.bf16.mxu0 %v2214
        %2303 = vmatpush1.bf16.msra.mxu0 %v2213
        %2304 = vmatprep.subr.bf16.mxu0 0
        %2305 = vmatpush1.bf16.msra.mxu0 0
        %2306 = vmatprep.subr.bf16.mxu0 0
        %2307 = vmatpush1.bf16.msra.mxu0 0
        %2308 = vmatprep.subr.bf16.mxu0 0
        %2309 = vmatpush1.bf16.msra.mxu0 0
        %2310 = vmatprep.subr.bf16.mxu0 0
        %2311 = vmatpush1.bf16.msra.mxu0 0
        %2312 = vmatprep.subr.bf16.mxu0 0
        %2313 = vmatpush1.bf16.msra.mxu0 0
        %2314 = vmatprep.subr.bf16.mxu0 0
        %2315 = vmatpush1.bf16.msra.mxu0 0
        %2316 = vmatprep.subr.bf16.mxu0 0
        %2317 = vmatpush1.bf16.msra.mxu0 0
        %2318 = vmatprep.subr.bf16.mxu0 0
        %2319 = vmatpush1.bf16.msra.mxu0 0
        %2320 = vmatprep.subr.bf16.mxu0 0
        %2321 = vmatpush1.bf16.msra.mxu0 0
        %2322 = vmatprep.subr.bf16.mxu0 0
        %2323 = vmatpush1.bf16.msra.mxu0 0
        %2324 = vmatprep.subr.bf16.mxu0 0
        %2325 = vmatpush1.bf16.msra.mxu0 0
        %2326 = vmatprep.subr.bf16.mxu0 0
        %2327 = vmatpush1.bf16.msra.mxu0 0
        %2328 = vmatprep.subr.bf16.mxu0 0
        %2329 = vmatpush1.bf16.msra.mxu0 0
        %2330 = vmatprep.mubr.bf16.mxu0 0
        %2331 = vmatmul.mubr.bf16.gmra.mrb[0].mxu0 %v2255
        %v2332 = vpop.f32.mrb[0].mxu0
        %v2333 = vadd.f32 %v2292, %v2332
        %v2334 = vpop.f32.mrb[0].mxu0
        %v2335 = vadd.f32 %v2294, %v2334
        %v2336 = vpop.f32.mrb[0].mxu0
        %v2337 = vpop.f32.mrb[0].mxu0
        %2338 = vdwg.mxu0
        %v2339 = vpack.c.bf16 %v2333, %v2333
        %v2340 = vpack.c.bf16 %v2335, %v2335
        %v2343 = vunpack.c.l.b16 %v2339
        %v2344 = vunpack.c.l.b16 %v2340
        %v2345 = vpack.c.b16 %v2344, %v2343
        %2347 = vst [vmem:[#allocation3] sm:$0xff] %v2345
        %s2348 = sand.u32 %s355, 1
        %s2349 = scalar_lea.sflag [#allocation8], %s2348
        %s2350 = sand.u32 %s355, 1
        %s2351 = smul.addr %s2350, 24
        %s2352 = scalar_lea.vmem [#allocation29], %s2351
        %s2353 = sand.u32 %s381, 1
        %s2354 = scalar_lea.sflag [#allocation31], %s2353
        %s2355 = sand.u32 %s381, 1
        %s2356 = smul.addr %s2355, 8
        %s2357 = scalar_lea.vmem [#allocation30], %s2356
        // Predicated region
        $region144: #{decoder_forward.1} parent=75 // pred_check
          %p2358 = pneg %p365
        $region145: #{decoder_forward.1} parent=75 // pred_check_branch
          %2360 = sbr.rel (%p2358) target = $region147
        $region146: #{decoder_forward.1} parent=75 // pred_region
          %s2362 = ssub.s32 384, 384
          %2363 = vsyncadd %s2349, %s2362
          %s2364 = smul.addr %s48, 3
          %s2365 = smul.addr %s2364, 128
          %s2366 = scalar_lea.hbm %s15, %s2365
          %s2368 = sshll.u32 %s2352, 4
          %s2369 = int_to_ptr.vmem [resolvable:$true] %s2368
          %2371 = dma.vmem_to_hbm [thread:$0]  %s2369, 384, %s2366, %s2349
        $region147: #{decoder_forward.1} parent=75 // pred_fallthru
          _
        // Predicated region
        $region148: #{decoder_forward.1} parent=75 // pred_check
          %p2372 = pneg %p391
        $region149: #{decoder_forward.1} parent=75 // pred_check_branch
          %2374 = sbr.rel (%p2372) target = $region151
        $region150: #{decoder_forward.1} parent=75 // pred_region
          %s2376 = ssub.s32 128, 128
          %2377 = vsyncadd %s2354, %s2376
          %s2378 = smul.addr %s48, 128
          %s2379 = scalar_lea.hbm %s16, %s2378
          %s2381 = sshll.u32 %s2357, 4
          %s2382 = int_to_ptr.vmem [resolvable:$true] %s2381
          %2384 = dma.vmem_to_hbm [thread:$0]  %s2382, 128, %s2379, %s2354
        $region151: #{decoder_forward.1} parent=75 // pred_fallthru
          _
      $region76: #{decoder_forward.1} parent=5 // pred_fallthru
        _
      %p2385 = scmp.le.s32.totalorder 2, %s43
      // Predicated region
      $region152: #{decoder_forward.1} parent=5 // pred_check
        %p2386 = pneg %p2385
      $region153: #{decoder_forward.1} parent=5 // pred_check_branch
        %2388 = sbr.rel (%p2386) target = $region155
      $region154: #{decoder_forward.1} parent=5 // pred_region
        %s2389 = ssub.s32 %s43, 2
        // Predicated region
        $region156: #{decoder_forward.1} parent=154 // pred_check
          %p2390 = pneg %p371
        $region157: #{decoder_forward.1} parent=154 // pred_check_branch
          %2392 = sbr.rel (%p2390) target = $region159
        $region158: #{decoder_forward.1} parent=154 // pred_region
          %s2393 = sand.u32 %s356, 1
          %s2394 = scalar_lea.sflag [#allocation8], %s2393
          %s2395 = sand.u32 %s356, 1
          %s2396 = smul.addr %s2395, 24
          %s2397 = scalar_lea.vmem [#allocation29], %s2396
          %2398 = dma.done %s2394, 384
        $region159: #{decoder_forward.1} parent=154 // pred_fallthru
          _
        // Predicated region
        $region160: #{decoder_forward.1} parent=154 // pred_check
          %p2399 = pneg %p397
        $region161: #{decoder_forward.1} parent=154 // pred_check_branch
          %2401 = sbr.rel (%p2399) target = $region163
        $region162: #{decoder_forward.1} parent=154 // pred_region
          %s2402 = sand.u32 %s382, 1
          %s2403 = scalar_lea.sflag [#allocation31], %s2402
          %s2404 = sand.u32 %s382, 1
          %s2405 = smul.addr %s2404, 8
          %s2406 = scalar_lea.vmem [#allocation30], %s2405
          %2407 = dma.done %s2403, 128
        $region163: #{decoder_forward.1} parent=154 // pred_fallthru
          _
      $region155: #{decoder_forward.1} parent=5 // pred_fallthru
        _
    $region6: #{decoder_forward.1} parent=1 // loop_footer
      %s47 = sadd.s32 1, %s43
    $region7: #{decoder_forward.1} parent=1 // loop_footer_branch
      %42 = sbr.rel target = $region3
    $region8: #{decoder_forward.1} parent=1 // loop_exit
      _
    %2408 = vsyncpa [#allocation7], 1
    %s2409 = scalar_lea.sflag [#allocation7], 1
    %2410 = vsyncpa %s2409, 1
    %2411 = vsyncpa [#allocation10], 1
    %2412 = vsyncpa [#allocation13], 1
    %2413 = vsyncpa [#allocation16], 1
    %s2414 = scalar_lea.sflag [#allocation16], 1
    %2415 = vsyncpa %s2414, 1
    %2416 = vsyncpa [#allocation19], 1
    %2417 = vsyncpa [#allocation22], 1
    %2418 = vsyncpa [#allocation25], 1
    %2419 = vsyncpa [#allocation28], 1
    %2420 = vsyncpa [#allocation8], 1
    %s2421 = scalar_lea.sflag [#allocation8], 1
    %2422 = vsyncpa %s2421, 1
    %2423 = vsyncpa [#allocation31], 1
    %s2424 = scalar_lea.sflag [#allocation31], 1
    %2425 = vsyncpa %s2424, 1

</llo_original>
